<compile_context>
chip_gen: v5e
topology: v5e:2x2
jax: 0.10.0
libtpu: 0.0.40
codegen_flags: <defaults>
</compile_context>

<pallas_src>
import jax
import jax.numpy as jnp
from jax.experimental import pallas as pl
from jax.experimental.pallas import tpu as pltpu

IMG_FEATS = 12 * 12 * 3          # 432
HIDDEN = 512
LEAKY_SLOPE = 0.01               # nn.LeakyReLU() default negative_slope
LANE = 128
SUBLANE_BF16 = 16                # bf16 vregs pack (16, 128)


def _round_up(x, m):
    return (x + m - 1) // m * m


def _forward_model_kernel(x_ref, w1_ref, b1_ref, w2_ref, b2_ref, o_ref):
    # Layer 1: bf16 MXU matmul with f32 accumulation; bias + LeakyReLU on VPU.
    h = jnp.dot(x_ref[...], w1_ref[...], preferred_element_type=jnp.float32)
    h = h + b1_ref[...]
    h = jnp.maximum(h, LEAKY_SLOPE * h)          # LeakyReLU as a single vmax
    # Layer 2: (tb, 512) @ (512, 432) -> (tb, 432), f32 accumulation.
    out = jnp.dot(h.astype(w2_ref.dtype), w2_ref[...],
                  preferred_element_type=jnp.float32)
    o_ref[...] = (out + b2_ref[...]).astype(o_ref.dtype)


def prepare_params(w1, b1, w2, b2, *, compute_dtype=jnp.bfloat16):
    """One-time pad/cast of the parameters (keep out of the per-call hot path).

    w1: (in_dim, 512), b1: (512,) or (1,512), w2: (512, 432), b2: (432,)/(1,432)
    Returns (w1p, b1p, w2p, b2p) with w1 zero-padded on its input dim to a
    multiple of 128 and both weights cast to compute_dtype; biases kept f32.
    """
    in_dim, h_dim = w1.shape
    out_dim = w2.shape[1]
    in_pad = _round_up(in_dim, LANE)                      # 436 -> 512
    w1p = jnp.pad(w1.astype(compute_dtype), ((0, in_pad - in_dim), (0, 0)))
    w2p = w2.astype(compute_dtype)                        # native 432-wide
    b1p = b1.reshape(1, h_dim).astype(jnp.float32)
    b2p = b2.reshape(1, out_dim).astype(jnp.float32)
    return w1p, b1p, w2p, b2p


def forward_model(x, w1p, b1p, w2p, b2p, *,
                  tile_b=1024,
                  out_dtype=jnp.float32,
                  compute_dtype=jnp.bfloat16):
    """x: [B, in_dim] -> [B, out_dim].  Params must come from prepare_params().

    Weights stored as (in_features, out_features); kernel does x @ W + b
    (== PyTorch x @ W.T with W of shape (out, in)).
    """
    B, in_dim = x.shape
    in_pad, h_dim = w1p.shape
    h_dim2, out_dim = w2p.shape
    assert h_dim == h_dim2
    assert in_dim <= in_pad

    # Batch tile: big enough to amortize the ~0.35us/step pipeline overhead,
    # small enough that the grid has >= 2 steps (both v7x TensorCores) when B
    # permits, rounded to 16 sublanes for clean bf16 packing.
    half_b = -(-B // 2)
    tb = min(int(tile_b), _round_up(half_b, SUBLANE_BF16))
    tb = max(SUBLANE_BF16, _round_up(tb, SUBLANE_BF16))
    b_pad = _round_up(B, tb)
    grid = (b_pad // tb,)

    # Only x is padded/cast per call.
    xp = jnp.pad(x.astype(compute_dtype),
                 ((0, b_pad - B), (0, in_pad - in_dim)))

    out_itemsize = jnp.dtype(out_dtype).itemsize
    cd_itemsize = jnp.dtype(compute_dtype).itemsize

    # VMEM budget: double-buffered x/out tiles + resident (double-buffered)
    # weights + hidden activation + headroom.  Clamp to a v7x-safe range.
    vmem_bytes = (
        2 * tb * in_pad * cd_itemsize                         # x tiles
        + 2 * tb * _round_up(out_dim, LANE) * out_itemsize    # out tiles
        + 2 * (in_pad * h_dim + h_dim * _round_up(out_dim, LANE)) * cd_itemsize
        + tb * h_dim * 4                                      # hidden (f32)
        + (4 << 20))                                          # headroom
    vmem_limit = int(min(max(vmem_bytes, 16 << 20), 64 << 20))

    flops = 2 * b_pad * (in_pad * h_dim + h_dim * out_dim)
    bytes_accessed = (
        xp.size * xp.dtype.itemsize
        + w1p.size * w1p.dtype.itemsize
        + w2p.size * w2p.dtype.itemsize
        + b1p.size * b1p.dtype.itemsize
        + b2p.size * b2p.dtype.itemsize
        + b_pad * out_dim * out_itemsize)

    out = pl.pallas_call(
        _forward_model_kernel,
        out_shape=jax.ShapeDtypeStruct((b_pad, out_dim), out_dtype),
        grid_spec=pltpu.PrefetchScalarGridSpec(
            num_scalar_prefetch=0,
            grid=grid,
            in_specs=[
                pl.BlockSpec((tb, in_pad), lambda i: (i, 0)),      # x tile
                pl.BlockSpec((in_pad, h_dim), lambda i: (0, 0)),   # W1 (resident)
                pl.BlockSpec((1, h_dim), lambda i: (0, 0)),        # b1 (resident)
                pl.BlockSpec((h_dim, out_dim), lambda i: (0, 0)),  # W2 (resident)
                pl.BlockSpec((1, out_dim), lambda i: (0, 0)),      # b2 (resident)
            ],
            out_specs=pl.BlockSpec((tb, out_dim), lambda i: (i, 0)),
        ),
        compiler_params=pltpu.CompilerParams(
            dimension_semantics=("parallel",),   # split batch across TCs (v7x)
            vmem_limit_bytes=vmem_limit,
        ),
        cost_estimate=pl.CostEstimate(
            flops=flops, transcendentals=0, bytes_accessed=bytes_accessed),
    )(xp, w1p, b1p, w2p, b2p)

    # Strip batch padding only (no feature padding, no dtype cast).
    return out[:B]


def init_params(key, action_size):
    """Deterministic synthetic init (shapes match the PyTorch module)."""
    in_dim = IMG_FEATS + action_size
    k1, k2, k3, k4 = jax.random.split(key, 4)
    s1 = 1.0 / jnp.sqrt(in_dim)
    s2 = 1.0 / jnp.sqrt(HIDDEN)
    w1 = jax.random.uniform(k1, (in_dim, HIDDEN), jnp.float32, -s1, s1)
    b1 = jax.random.uniform(k2, (1, HIDDEN), jnp.float32, -s1, s1)
    w2 = jax.random.uniform(k3, (HIDDEN, IMG_FEATS), jnp.float32, -s2, s2)
    b2 = jax.random.uniform(k4, (1, IMG_FEATS), jnp.float32, -s2, s2)
    return w1, b1, w2, b2


def reference_f32(x, w1, b1, w2, b2):
    h = x @ w1 + b1.reshape(1, -1)
    h = jnp.where(h > 0, h, LEAKY_SLOPE * h)
    return h @ w2 + b2.reshape(1, -1)


def reference_bf16(x, w1, b1, w2, b2):
    """Same math as the kernel (bf16 operands, f32 accumulation)."""
    cd = jnp.bfloat16
    h = jnp.dot(x.astype(cd), w1.astype(cd),
                preferred_element_type=jnp.float32) + b1.reshape(1, -1)
    h = jnp.where(h > 0, h, LEAKY_SLOPE * h)
    return jnp.dot(h.astype(cd), w2.astype(cd),
                   preferred_element_type=jnp.float32) + b2.reshape(1, -1)


if __name__ == "__main__":
    action_size = 4
    batch = 2
    in_dim = IMG_FEATS + action_size  # 436

    key = jax.random.PRNGKey(0)
    kx, kp = jax.random.split(key)
    x = jax.random.normal(kx, (batch, in_dim), jnp.float32)
    w1, b1, w2, b2 = init_params(kp, action_size)

    # One-time parameter preparation (pad/cast hoisted out of the hot path).
    w1p, b1p, w2p, b2p = prepare_params(w1, b1, w2, b2)
    w1p, b1p, w2p, b2p = jax.block_until_ready((w1p, b1p, w2p, b2p))

    out = forward_model(x, w1p, b1p, w2p, b2p)
    out = jax.block_until_ready(out)
    assert out.shape == (batch, IMG_FEATS)
    assert out.dtype == jnp.float32

    # Exact check against a reference doing the identical bf16/f32-acc math.
    ref_bf16 = reference_bf16(x, w1, b1, w2, b2)
    assert jnp.allclose(out, ref_bf16, atol=1e-4, rtol=1e-4), \
        "mismatch vs bf16-accumulated reference"

    # Sanity check against the pure-f32 PyTorch-equivalent math
    # (loose tolerance accounts for bf16 operand rounding).
    ref_f32 = reference_f32(x, w1, b1, w2, b2)
    assert jnp.allclose(out, ref_f32, atol=5e-2, rtol=5e-2), \
        "mismatch vs f32 reference"

    print("KERNEL_OK")
</pallas_src>

<mosaic_0001>
module attributes {stable_mosaic.version = 11 : i64} {
  func.func @_forward_model_kernel(%arg0: i32, %arg1: memref<16x512xbf16, #tpu.memory_space<vmem>>, %arg2: memref<512x512xbf16, #tpu.memory_space<vmem>>, %arg3: memref<1x512xf32, #tpu.memory_space<vmem>>, %arg4: memref<512x432xbf16, #tpu.memory_space<vmem>>, %arg5: memref<1x432xf32, #tpu.memory_space<vmem>>, %arg6: memref<16x432xf32, #tpu.memory_space<vmem>>) attributes {dimension_semantics = [#tpu.dimension_semantics<parallel>], iteration_bounds = array<i64: 1>, scalar_prefetch = 0 : i64, scratch_operands = 0 : i64, tpu.core_type = #tpu.core_type<tc>, window_params = [{transform_indices = @transform_0, window_bounds = array<i64: 16, 512>}, {pipeline_mode = #tpu.pipeline_mode<synchronous>, transform_indices = @transform_1, window_bounds = array<i64: 512, 512>}, {pipeline_mode = #tpu.pipeline_mode<synchronous>, transform_indices = @transform_2, window_bounds = array<i64: 1, 512>}, {pipeline_mode = #tpu.pipeline_mode<synchronous>, transform_indices = @transform_3, window_bounds = array<i64: 512, 432>}, {pipeline_mode = #tpu.pipeline_mode<synchronous>, transform_indices = @transform_4, window_bounds = array<i64: 1, 432>}, {transform_indices = @transform_5, window_bounds = array<i64: 16, 432>}]} {
    %c0 = arith.constant 0 : index
    %c0_0 = arith.constant 0 : index
    %0 = vector.load %arg1[%c0, %c0_0] : memref<16x512xbf16, #tpu.memory_space<vmem>>, vector<16x512xbf16>
    %c0_1 = arith.constant 0 : index
    %c0_2 = arith.constant 0 : index
    %1 = vector.load %arg2[%c0_1, %c0_2] : memref<512x512xbf16, #tpu.memory_space<vmem>>, vector<512x512xbf16>
    %cst = arith.constant dense<0.000000e+00> : vector<16x512xf32>
    %2 = tpu.matmul %0, %1, %cst {dimension_numbers = #tpu.dot_dimension_numbers<[1], [0], [0], [1], [0, 0, 1, 1], [], []>} : vector<16x512xbf16>, vector<512x512xbf16>, vector<16x512xf32> -> vector<16x512xf32>
    %c0_3 = arith.constant 0 : index
    %c0_4 = arith.constant 0 : index
    %3 = vector.load %arg3[%c0_3, %c0_4] : memref<1x512xf32, #tpu.memory_space<vmem>>, vector<1x512xf32>
    %4 = vector.broadcast %3 : vector<1x512xf32> to vector<16x512xf32>
    %5 = arith.addf %2, %4 : vector<16x512xf32>
    %cst_5 = arith.constant 0.00999999977 : f32
    %6 = vector.broadcast %cst_5 : f32 to vector<16x512xf32>
    %7 = arith.mulf %6, %5 : vector<16x512xf32>
    %8 = arith.maximumf %5, %7 : vector<16x512xf32>
    %9 = arith.truncf %8 : vector<16x512xf32> to vector<16x512xbf16>
    %c0_6 = arith.constant 0 : index
    %c0_7 = arith.constant 0 : index
    %10 = vector.load %arg4[%c0_6, %c0_7] : memref<512x432xbf16, #tpu.memory_space<vmem>>, vector<512x432xbf16>
    %cst_8 = arith.constant dense<0.000000e+00> : vector<16x432xf32>
    %11 = tpu.matmul %9, %10, %cst_8 {dimension_numbers = #tpu.dot_dimension_numbers<[1], [0], [0], [1], [0, 0, 1, 1], [], []>} : vector<16x512xbf16>, vector<512x432xbf16>, vector<16x432xf32> -> vector<16x432xf32>
    %c0_9 = arith.constant 0 : index
    %c0_10 = arith.constant 0 : index
    %12 = vector.load %arg5[%c0_9, %c0_10] : memref<1x432xf32, #tpu.memory_space<vmem>>, vector<1x432xf32>
    %13 = vector.broadcast %12 : vector<1x432xf32> to vector<16x432xf32>
    %14 = arith.addf %11, %13 : vector<16x432xf32>
    %c0_11 = arith.constant 0 : index
    %c0_12 = arith.constant 0 : index
    %15 = vector.load %arg6[%c0_11, %c0_12] : memref<16x432xf32, #tpu.memory_space<vmem>>, vector<16x432xf32>
    tpu.vector_store %arg6[%c0_11, %c0_12], %14 {strides = array<i32>} : memref<16x432xf32, #tpu.memory_space<vmem>>, vector<16x432xf32>,
    return
  }
  func.func @transform_0(%arg0: i32) -> (i32, i32) {
    %c0_i32 = arith.constant 0 : i32
    %c0_i32_0 = arith.constant 0 : i32
    return %arg0, %c0_i32 : i32, i32
  }
  func.func @transform_1(%arg0: i32) -> (i32, i32) {
    %c0_i32 = arith.constant 0 : i32
    %c0_i32_0 = arith.constant 0 : i32
    %c0_i32_1 = arith.constant 0 : i32
    return %c0_i32, %c0_i32_0 : i32, i32
  }
  func.func @transform_2(%arg0: i32) -> (i32, i32) {
    %c0_i32 = arith.constant 0 : i32
    %c0_i32_0 = arith.constant 0 : i32
    %c0_i32_1 = arith.constant 0 : i32
    return %c0_i32, %c0_i32_0 : i32, i32
  }
  func.func @transform_3(%arg0: i32) -> (i32, i32) {
    %c0_i32 = arith.constant 0 : i32
    %c0_i32_0 = arith.constant 0 : i32
    %c0_i32_1 = arith.constant 0 : i32
    return %c0_i32, %c0_i32_0 : i32, i32
  }
  func.func @transform_4(%arg0: i32) -> (i32, i32) {
    %c0_i32 = arith.constant 0 : i32
    %c0_i32_0 = arith.constant 0 : i32
    %c0_i32_1 = arith.constant 0 : i32
    return %c0_i32, %c0_i32_0 : i32, i32
  }
  func.func @transform_5(%arg0: i32) -> (i32, i32) {
    %c0_i32 = arith.constant 0 : i32
    %c0_i32_0 = arith.constant 0 : i32
    return %arg0, %c0_i32 : i32, i32
  }
}

</mosaic_0001>

<llo_original>
// kernel: tpu_custom_call.1
$region0: #{tpu_custom_call.1}
  #allocation0 [shape = 'u32[]', space=smem, size = 0x4, offset = 0x4, fixed_abs, tag = 'smem constant byte address 0x4 - core index']
  #allocation1 [shape = 'u32[72,128]{1,0:T(1,128)}', space=vmem, size = 0x9000, scoped, tag = 'internal scratch']
  %s0 = inlined_call_operand.vmem [shape: bf16[16,512], index: 0, kind: input, shape index: {}]
  %s1 = inlined_call_operand.vmem [shape: bf16[512,512], index: 1, kind: input, shape index: {}]
  %s2 = inlined_call_operand.vmem [shape: f32[1,512], index: 2, kind: input, shape index: {}]
  %s3 = inlined_call_operand.vmem [shape: bf16[512,432], index: 3, kind: input, shape index: {}]
  %s4 = inlined_call_operand.vmem [shape: f32[1,432], index: 4, kind: input, shape index: {}]
  %s5 = inlined_call_operand.hbm [shape: f32[16,432], index: 5, kind: output, shape index: {}]
  %s6 = sld [smem:[#allocation0]]
  $region30: #{tpu_custom_call.1} parent=0
    _
  %s8 = ssub.s32 1, %s6
  %s9 = scalar_select 0, %s8, %s6
  $region1: #{tpu_custom_call.1} parent=0
    #allocation2 [shape = 'u8[32768]{0}', space=vmem, size = 0x8000, scoped, tag = 'output window, operand 0, single buffered']
    #allocation3 [shape = 's32[1]{0}', space=sflag, size = 0x4, scoped, tag = 'scoped memory for tpu_custom_call.1']
    %10 = vsyncpa [#allocation3], 0
    // Predicated region
    $region2: #{tpu_custom_call.1} parent=1 // pred_check
      _
    $region3: #{tpu_custom_call.1} parent=1 // pred_check_branch
      %12 = sbr.rel (0) target = $region5
    $region4: #{tpu_custom_call.1} parent=1 // pred_region
      _
    $region5: #{tpu_custom_call.1} parent=1 // pred_fallthru
      _
    // Predicated region
    $region6: #{tpu_custom_call.1} parent=1 // pred_check
      _
    $region7: #{tpu_custom_call.1} parent=1 // pred_check_branch
      %14 = sbr.rel (0) target = $region9
    $region8: #{tpu_custom_call.1} parent=1 // pred_region
      _
    $region9: #{tpu_custom_call.1} parent=1 // pred_fallthru
      _
    // Predicated region
    $region10: #{tpu_custom_call.1} parent=1 // pred_check
      _
    $region11: #{tpu_custom_call.1} parent=1 // pred_check_branch
      %16 = sbr.rel (0) target = $region13
    $region12: #{tpu_custom_call.1} parent=1 // pred_region
      _
    $region13: #{tpu_custom_call.1} parent=1 // pred_fallthru
      _
    // Predicated region
    $region14: #{tpu_custom_call.1} parent=1 // pred_check
      _
    $region15: #{tpu_custom_call.1} parent=1 // pred_check_branch
      %18 = sbr.rel (0) target = $region17
    $region16: #{tpu_custom_call.1} parent=1 // pred_region
      _
    $region17: #{tpu_custom_call.1} parent=1 // pred_fallthru
      _
    // Predicated region
    $region18: #{tpu_custom_call.1} parent=1 // pred_check
      _
    $region19: #{tpu_custom_call.1} parent=1 // pred_check_branch
      %20 = sbr.rel (0) target = $region21
    $region20: #{tpu_custom_call.1} parent=1 // pred_region
      _
    $region21: #{tpu_custom_call.1} parent=1 // pred_fallthru
      _
    %v21 = vld [vmem:[%s0] sm:$0xff]
    %v22 = vld [vmem:[%s0 + $0x8] sm:$0xff]
    %v23 = vld [vmem:[%s0 + $0x10] sm:$0xff]
    %v24 = vld [vmem:[%s0 + $0x18] sm:$0xff]
    %v25 = vld [vmem:[%s1] sm:$0xff]
    %v26 = vld [vmem:[%s1 + $0x8] sm:$0xff]
    %v27 = vld [vmem:[%s1 + $0x10] sm:$0xff]
    %v28 = vld [vmem:[%s1 + $0x18] sm:$0xff]
    %v29 = vld [vmem:[%s1 + $0x20] sm:$0xff]
    %v30 = vld [vmem:[%s1 + $0x28] sm:$0xff]
    %v31 = vld [vmem:[%s1 + $0x30] sm:$0xff]
    %v32 = vld [vmem:[%s1 + $0x38] sm:$0xff]
    %v33 = vld [vmem:[%s1 + $0x40] sm:$0xff]
    %v34 = vld [vmem:[%s1 + $0x48] sm:$0xff]
    %v35 = vld [vmem:[%s1 + $0x50] sm:$0xff]
    %v36 = vld [vmem:[%s1 + $0x58] sm:$0xff]
    %v37 = vld [vmem:[%s1 + $0x60] sm:$0xff]
    %v38 = vld [vmem:[%s1 + $0x68] sm:$0xff]
    %v39 = vld [vmem:[%s1 + $0x70] sm:$0xff]
    %v40 = vld [vmem:[%s1 + $0x78] sm:$0xff]
    %v41 = vld [vmem:[%s1 + $0x80] sm:$0xff]
    %v42 = vld [vmem:[%s1 + $0x88] sm:$0xff]
    %v43 = vld [vmem:[%s1 + $0x90] sm:$0xff]
    %v44 = vld [vmem:[%s1 + $0x98] sm:$0xff]
    %v45 = vld [vmem:[%s1 + $0xa0] sm:$0xff]
    %v46 = vld [vmem:[%s1 + $0xa8] sm:$0xff]
    %v47 = vld [vmem:[%s1 + $0xb0] sm:$0xff]
    %v48 = vld [vmem:[%s1 + $0xb8] sm:$0xff]
    %v49 = vld [vmem:[%s1 + $0xc0] sm:$0xff]
    %v50 = vld [vmem:[%s1 + $0xc8] sm:$0xff]
    %v51 = vld [vmem:[%s1 + $0xd0] sm:$0xff]
    %v52 = vld [vmem:[%s1 + $0xd8] sm:$0xff]
    %v53 = vld [vmem:[%s1 + $0xe0] sm:$0xff]
    %v54 = vld [vmem:[%s1 + $0xe8] sm:$0xff]
    %v55 = vld [vmem:[%s1 + $0xf0] sm:$0xff]
    %v56 = vld [vmem:[%s1 + $0xf8] sm:$0xff]
    %v57 = vld [vmem:[%s1 + $0x100] sm:$0xff]
    %v58 = vld [vmem:[%s1 + $0x108] sm:$0xff]
    %v59 = vld [vmem:[%s1 + $0x110] sm:$0xff]
    %v60 = vld [vmem:[%s1 + $0x118] sm:$0xff]
    %v61 = vld [vmem:[%s1 + $0x120] sm:$0xff]
    %v62 = vld [vmem:[%s1 + $0x128] sm:$0xff]
    %v63 = vld [vmem:[%s1 + $0x130] sm:$0xff]
    %v64 = vld [vmem:[%s1 + $0x138] sm:$0xff]
    %v65 = vld [vmem:[%s1 + $0x140] sm:$0xff]
    %v66 = vld [vmem:[%s1 + $0x148] sm:$0xff]
    %v67 = vld [vmem:[%s1 + $0x150] sm:$0xff]
    %v68 = vld [vmem:[%s1 + $0x158] sm:$0xff]
    %v69 = vld [vmem:[%s1 + $0x160] sm:$0xff]
    %v70 = vld [vmem:[%s1 + $0x168] sm:$0xff]
    %v71 = vld [vmem:[%s1 + $0x170] sm:$0xff]
    %v72 = vld [vmem:[%s1 + $0x178] sm:$0xff]
    %v73 = vld [vmem:[%s1 + $0x180] sm:$0xff]
    %v74 = vld [vmem:[%s1 + $0x188] sm:$0xff]
    %v75 = vld [vmem:[%s1 + $0x190] sm:$0xff]
    %v76 = vld [vmem:[%s1 + $0x198] sm:$0xff]
    %v77 = vld [vmem:[%s1 + $0x1a0] sm:$0xff]
    %v78 = vld [vmem:[%s1 + $0x1a8] sm:$0xff]
    %v79 = vld [vmem:[%s1 + $0x1b0] sm:$0xff]
    %v80 = vld [vmem:[%s1 + $0x1b8] sm:$0xff]
    %v81 = vld [vmem:[%s1 + $0x1c0] sm:$0xff]
    %v82 = vld [vmem:[%s1 + $0x1c8] sm:$0xff]
    %v83 = vld [vmem:[%s1 + $0x1d0] sm:$0xff]
    %v84 = vld [vmem:[%s1 + $0x1d8] sm:$0xff]
    %v85 = vld [vmem:[%s1 + $0x1e0] sm:$0xff]
    %v86 = vld [vmem:[%s1 + $0x1e8] sm:$0xff]
    %v87 = vld [vmem:[%s1 + $0x1f0] sm:$0xff]
    %v88 = vld [vmem:[%s1 + $0x1f8] sm:$0xff]
    %v89 = vld [vmem:[%s1 + $0x200] sm:$0xff]
    %v90 = vld [vmem:[%s1 + $0x208] sm:$0xff]
    %v91 = vld [vmem:[%s1 + $0x210] sm:$0xff]
    %v92 = vld [vmem:[%s1 + $0x218] sm:$0xff]
    %v93 = vld [vmem:[%s1 + $0x220] sm:$0xff]
    %v94 = vld [vmem:[%s1 + $0x228] sm:$0xff]
    %v95 = vld [vmem:[%s1 + $0x230] sm:$0xff]
    %v96 = vld [vmem:[%s1 + $0x238] sm:$0xff]
    %v97 = vld [vmem:[%s1 + $0x240] sm:$0xff]
    %v98 = vld [vmem:[%s1 + $0x248] sm:$0xff]
    %v99 = vld [vmem:[%s1 + $0x250] sm:$0xff]
    %v100 = vld [vmem:[%s1 + $0x258] sm:$0xff]
    %v101 = vld [vmem:[%s1 + $0x260] sm:$0xff]
    %v102 = vld [vmem:[%s1 + $0x268] sm:$0xff]
    %v103 = vld [vmem:[%s1 + $0x270] sm:$0xff]
    %v104 = vld [vmem:[%s1 + $0x278] sm:$0xff]
    %v105 = vld [vmem:[%s1 + $0x280] sm:$0xff]
    %v106 = vld [vmem:[%s1 + $0x288] sm:$0xff]
    %v107 = vld [vmem:[%s1 + $0x290] sm:$0xff]
    %v108 = vld [vmem:[%s1 + $0x298] sm:$0xff]
    %v109 = vld [vmem:[%s1 + $0x2a0] sm:$0xff]
    %v110 = vld [vmem:[%s1 + $0x2a8] sm:$0xff]
    %v111 = vld [vmem:[%s1 + $0x2b0] sm:$0xff]
    %v112 = vld [vmem:[%s1 + $0x2b8] sm:$0xff]
    %v113 = vld [vmem:[%s1 + $0x2c0] sm:$0xff]
    %v114 = vld [vmem:[%s1 + $0x2c8] sm:$0xff]
    %v115 = vld [vmem:[%s1 + $0x2d0] sm:$0xff]
    %v116 = vld [vmem:[%s1 + $0x2d8] sm:$0xff]
    %v117 = vld [vmem:[%s1 + $0x2e0] sm:$0xff]
    %v118 = vld [vmem:[%s1 + $0x2e8] sm:$0xff]
    %v119 = vld [vmem:[%s1 + $0x2f0] sm:$0xff]
    %v120 = vld [vmem:[%s1 + $0x2f8] sm:$0xff]
    %v121 = vld [vmem:[%s1 + $0x300] sm:$0xff]
    %v122 = vld [vmem:[%s1 + $0x308] sm:$0xff]
    %v123 = vld [vmem:[%s1 + $0x310] sm:$0xff]
    %v124 = vld [vmem:[%s1 + $0x318] sm:$0xff]
    %v125 = vld [vmem:[%s1 + $0x320] sm:$0xff]
    %v126 = vld [vmem:[%s1 + $0x328] sm:$0xff]
    %v127 = vld [vmem:[%s1 + $0x330] sm:$0xff]
    %v128 = vld [vmem:[%s1 + $0x338] sm:$0xff]
    %v129 = vld [vmem:[%s1 + $0x340] sm:$0xff]
    %v130 = vld [vmem:[%s1 + $0x348] sm:$0xff]
    %v131 = vld [vmem:[%s1 + $0x350] sm:$0xff]
    %v132 = vld [vmem:[%s1 + $0x358] sm:$0xff]
    %v133 = vld [vmem:[%s1 + $0x360] sm:$0xff]
    %v134 = vld [vmem:[%s1 + $0x368] sm:$0xff]
    %v135 = vld [vmem:[%s1 + $0x370] sm:$0xff]
    %v136 = vld [vmem:[%s1 + $0x378] sm:$0xff]
    %v137 = vld [vmem:[%s1 + $0x380] sm:$0xff]
    %v138 = vld [vmem:[%s1 + $0x388] sm:$0xff]
    %v139 = vld [vmem:[%s1 + $0x390] sm:$0xff]
    %v140 = vld [vmem:[%s1 + $0x398] sm:$0xff]
    %v141 = vld [vmem:[%s1 + $0x3a0] sm:$0xff]
    %v142 = vld [vmem:[%s1 + $0x3a8] sm:$0xff]
    %v143 = vld [vmem:[%s1 + $0x3b0] sm:$0xff]
    %v144 = vld [vmem:[%s1 + $0x3b8] sm:$0xff]
    %v145 = vld [vmem:[%s1 + $0x3c0] sm:$0xff]
    %v146 = vld [vmem:[%s1 + $0x3c8] sm:$0xff]
    %v147 = vld [vmem:[%s1 + $0x3d0] sm:$0xff]
    %v148 = vld [vmem:[%s1 + $0x3d8] sm:$0xff]
    %v149 = vld [vmem:[%s1 + $0x3e0] sm:$0xff]
    %v150 = vld [vmem:[%s1 + $0x3e8] sm:$0xff]
    %v151 = vld [vmem:[%s1 + $0x3f0] sm:$0xff]
    %v152 = vld [vmem:[%s1 + $0x3f8] sm:$0xff]
    %v153 = vld [vmem:[%s2] sm:$0xf]
    %v155 = vperm.slane %v153, 0
    %v156 = vperm.slane %v153, 1
    %v157 = vperm.slane %v153, 2
    %v158 = vperm.slane %v153, 3
    %v167 = vunpack.c.l.b16 %v21
    %v168 = vunpack.c.h.b16 %v21
    %v169 = vunpack.c.l.b16 %v22
    %v170 = vunpack.c.h.b16 %v22
    %v171 = vunpack.c.l.b16 %v23
    %v172 = vunpack.c.h.b16 %v23
    %v173 = vunpack.c.l.b16 %v24
    %v174 = vunpack.c.h.b16 %v24
    %v175 = vpack.c.b16 %v171, %v167
    %v176 = vpack.c.b16 %v172, %v168
    %v177 = vpack.c.b16 %v173, %v169
    %v178 = vpack.c.b16 %v174, %v170
    %v311 = vunpack.c.l.b16 %v25
    %v312 = vunpack.c.h.b16 %v25
    %v313 = vunpack.c.l.b16 %v26
    %v314 = vunpack.c.h.b16 %v26
    %v315 = vunpack.c.l.b16 %v27
    %v316 = vunpack.c.h.b16 %v27
    %v317 = vunpack.c.l.b16 %v28
    %v318 = vunpack.c.h.b16 %v28
    %v319 = vunpack.c.l.b16 %v29
    %v320 = vunpack.c.h.b16 %v29
    %v321 = vunpack.c.l.b16 %v30
    %v322 = vunpack.c.h.b16 %v30
    %v323 = vunpack.c.l.b16 %v31
    %v324 = vunpack.c.h.b16 %v31
    %v325 = vunpack.c.l.b16 %v32
    %v326 = vunpack.c.h.b16 %v32
    %v327 = vunpack.c.l.b16 %v33
    %v328 = vunpack.c.h.b16 %v33
    %v329 = vunpack.c.l.b16 %v34
    %v330 = vunpack.c.h.b16 %v34
    %v331 = vunpack.c.l.b16 %v35
    %v332 = vunpack.c.h.b16 %v35
    %v333 = vunpack.c.l.b16 %v36
    %v334 = vunpack.c.h.b16 %v36
    %v335 = vunpack.c.l.b16 %v37
    %v336 = vunpack.c.h.b16 %v37
    %v337 = vunpack.c.l.b16 %v38
    %v338 = vunpack.c.h.b16 %v38
    %v339 = vunpack.c.l.b16 %v39
    %v340 = vunpack.c.h.b16 %v39
    %v341 = vunpack.c.l.b16 %v40
    %v342 = vunpack.c.h.b16 %v40
    %v343 = vunpack.c.l.b16 %v41
    %v344 = vunpack.c.h.b16 %v41
    %v345 = vunpack.c.l.b16 %v42
    %v346 = vunpack.c.h.b16 %v42
    %v347 = vunpack.c.l.b16 %v43
    %v348 = vunpack.c.h.b16 %v43
    %v349 = vunpack.c.l.b16 %v44
    %v350 = vunpack.c.h.b16 %v44
    %v351 = vunpack.c.l.b16 %v45
    %v352 = vunpack.c.h.b16 %v45
    %v353 = vunpack.c.l.b16 %v46
    %v354 = vunpack.c.h.b16 %v46
    %v355 = vunpack.c.l.b16 %v47
    %v356 = vunpack.c.h.b16 %v47
    %v357 = vunpack.c.l.b16 %v48
    %v358 = vunpack.c.h.b16 %v48
    %v359 = vunpack.c.l.b16 %v49
    %v360 = vunpack.c.h.b16 %v49
    %v361 = vunpack.c.l.b16 %v50
    %v362 = vunpack.c.h.b16 %v50
    %v363 = vunpack.c.l.b16 %v51
    %v364 = vunpack.c.h.b16 %v51
    %v365 = vunpack.c.l.b16 %v52
    %v366 = vunpack.c.h.b16 %v52
    %v367 = vunpack.c.l.b16 %v53
    %v368 = vunpack.c.h.b16 %v53
    %v369 = vunpack.c.l.b16 %v54
    %v370 = vunpack.c.h.b16 %v54
    %v371 = vunpack.c.l.b16 %v55
    %v372 = vunpack.c.h.b16 %v55
    %v373 = vunpack.c.l.b16 %v56
    %v374 = vunpack.c.h.b16 %v56
    %v375 = vunpack.c.l.b16 %v57
    %v376 = vunpack.c.h.b16 %v57
    %v377 = vunpack.c.l.b16 %v58
    %v378 = vunpack.c.h.b16 %v58
    %v379 = vunpack.c.l.b16 %v59
    %v380 = vunpack.c.h.b16 %v59
    %v381 = vunpack.c.l.b16 %v60
    %v382 = vunpack.c.h.b16 %v60
    %v383 = vunpack.c.l.b16 %v61
    %v384 = vunpack.c.h.b16 %v61
    %v385 = vunpack.c.l.b16 %v62
    %v386 = vunpack.c.h.b16 %v62
    %v387 = vunpack.c.l.b16 %v63
    %v388 = vunpack.c.h.b16 %v63
    %v389 = vunpack.c.l.b16 %v64
    %v390 = vunpack.c.h.b16 %v64
    %v391 = vunpack.c.l.b16 %v65
    %v392 = vunpack.c.h.b16 %v65
    %v393 = vunpack.c.l.b16 %v66
    %v394 = vunpack.c.h.b16 %v66
    %v395 = vunpack.c.l.b16 %v67
    %v396 = vunpack.c.h.b16 %v67
    %v397 = vunpack.c.l.b16 %v68
    %v398 = vunpack.c.h.b16 %v68
    %v399 = vunpack.c.l.b16 %v69
    %v400 = vunpack.c.h.b16 %v69
    %v401 = vunpack.c.l.b16 %v70
    %v402 = vunpack.c.h.b16 %v70
    %v403 = vunpack.c.l.b16 %v71
    %v404 = vunpack.c.h.b16 %v71
    %v405 = vunpack.c.l.b16 %v72
    %v406 = vunpack.c.h.b16 %v72
    %v407 = vunpack.c.l.b16 %v73
    %v408 = vunpack.c.h.b16 %v73
    %v409 = vunpack.c.l.b16 %v74
    %v410 = vunpack.c.h.b16 %v74
    %v411 = vunpack.c.l.b16 %v75
    %v412 = vunpack.c.h.b16 %v75
    %v413 = vunpack.c.l.b16 %v76
    %v414 = vunpack.c.h.b16 %v76
    %v415 = vunpack.c.l.b16 %v77
    %v416 = vunpack.c.h.b16 %v77
    %v417 = vunpack.c.l.b16 %v78
    %v418 = vunpack.c.h.b16 %v78
    %v419 = vunpack.c.l.b16 %v79
    %v420 = vunpack.c.h.b16 %v79
    %v421 = vunpack.c.l.b16 %v80
    %v422 = vunpack.c.h.b16 %v80
    %v423 = vunpack.c.l.b16 %v81
    %v424 = vunpack.c.h.b16 %v81
    %v425 = vunpack.c.l.b16 %v82
    %v426 = vunpack.c.h.b16 %v82
    %v427 = vunpack.c.l.b16 %v83
    %v428 = vunpack.c.h.b16 %v83
    %v429 = vunpack.c.l.b16 %v84
    %v430 = vunpack.c.h.b16 %v84
    %v431 = vunpack.c.l.b16 %v85
    %v432 = vunpack.c.h.b16 %v85
    %v433 = vunpack.c.l.b16 %v86
    %v434 = vunpack.c.h.b16 %v86
    %v435 = vunpack.c.l.b16 %v87
    %v436 = vunpack.c.h.b16 %v87
    %v437 = vunpack.c.l.b16 %v88
    %v438 = vunpack.c.h.b16 %v88
    %v439 = vunpack.c.l.b16 %v89
    %v440 = vunpack.c.h.b16 %v89
    %v441 = vunpack.c.l.b16 %v90
    %v442 = vunpack.c.h.b16 %v90
    %v443 = vunpack.c.l.b16 %v91
    %v444 = vunpack.c.h.b16 %v91
    %v445 = vunpack.c.l.b16 %v92
    %v446 = vunpack.c.h.b16 %v92
    %v447 = vunpack.c.l.b16 %v93
    %v448 = vunpack.c.h.b16 %v93
    %v449 = vunpack.c.l.b16 %v94
    %v450 = vunpack.c.h.b16 %v94
    %v451 = vunpack.c.l.b16 %v95
    %v452 = vunpack.c.h.b16 %v95
    %v453 = vunpack.c.l.b16 %v96
    %v454 = vunpack.c.h.b16 %v96
    %v455 = vunpack.c.l.b16 %v97
    %v456 = vunpack.c.h.b16 %v97
    %v457 = vunpack.c.l.b16 %v98
    %v458 = vunpack.c.h.b16 %v98
    %v459 = vunpack.c.l.b16 %v99
    %v460 = vunpack.c.h.b16 %v99
    %v461 = vunpack.c.l.b16 %v100
    %v462 = vunpack.c.h.b16 %v100
    %v463 = vunpack.c.l.b16 %v101
    %v464 = vunpack.c.h.b16 %v101
    %v465 = vunpack.c.l.b16 %v102
    %v466 = vunpack.c.h.b16 %v102
    %v467 = vunpack.c.l.b16 %v103
    %v468 = vunpack.c.h.b16 %v103
    %v469 = vunpack.c.l.b16 %v104
    %v470 = vunpack.c.h.b16 %v104
    %v471 = vunpack.c.l.b16 %v105
    %v472 = vunpack.c.h.b16 %v105
    %v473 = vunpack.c.l.b16 %v106
    %v474 = vunpack.c.h.b16 %v106
    %v475 = vunpack.c.l.b16 %v107
    %v476 = vunpack.c.h.b16 %v107
    %v477 = vunpack.c.l.b16 %v108
    %v478 = vunpack.c.h.b16 %v108
    %v479 = vunpack.c.l.b16 %v109
    %v480 = vunpack.c.h.b16 %v109
    %v481 = vunpack.c.l.b16 %v110
    %v482 = vunpack.c.h.b16 %v110
    %v483 = vunpack.c.l.b16 %v111
    %v484 = vunpack.c.h.b16 %v111
    %v485 = vunpack.c.l.b16 %v112
    %v486 = vunpack.c.h.b16 %v112
    %v487 = vunpack.c.l.b16 %v113
    %v488 = vunpack.c.h.b16 %v113
    %v489 = vunpack.c.l.b16 %v114
    %v490 = vunpack.c.h.b16 %v114
    %v491 = vunpack.c.l.b16 %v115
    %v492 = vunpack.c.h.b16 %v115
    %v493 = vunpack.c.l.b16 %v116
    %v494 = vunpack.c.h.b16 %v116
    %v495 = vunpack.c.l.b16 %v117
    %v496 = vunpack.c.h.b16 %v117
    %v497 = vunpack.c.l.b16 %v118
    %v498 = vunpack.c.h.b16 %v118
    %v499 = vunpack.c.l.b16 %v119
    %v500 = vunpack.c.h.b16 %v119
    %v501 = vunpack.c.l.b16 %v120
    %v502 = vunpack.c.h.b16 %v120
    %v503 = vunpack.c.l.b16 %v121
    %v504 = vunpack.c.h.b16 %v121
    %v505 = vunpack.c.l.b16 %v122
    %v506 = vunpack.c.h.b16 %v122
    %v507 = vunpack.c.l.b16 %v123
    %v508 = vunpack.c.h.b16 %v123
    %v509 = vunpack.c.l.b16 %v124
    %v510 = vunpack.c.h.b16 %v124
    %v511 = vunpack.c.l.b16 %v125
    %v512 = vunpack.c.h.b16 %v125
    %v513 = vunpack.c.l.b16 %v126
    %v514 = vunpack.c.h.b16 %v126
    %v515 = vunpack.c.l.b16 %v127
    %v516 = vunpack.c.h.b16 %v127
    %v517 = vunpack.c.l.b16 %v128
    %v518 = vunpack.c.h.b16 %v128
    %v519 = vunpack.c.l.b16 %v129
    %v520 = vunpack.c.h.b16 %v129
    %v521 = vunpack.c.l.b16 %v130
    %v522 = vunpack.c.h.b16 %v130
    %v523 = vunpack.c.l.b16 %v131
    %v524 = vunpack.c.h.b16 %v131
    %v525 = vunpack.c.l.b16 %v132
    %v526 = vunpack.c.h.b16 %v132
    %v527 = vunpack.c.l.b16 %v133
    %v528 = vunpack.c.h.b16 %v133
    %v529 = vunpack.c.l.b16 %v134
    %v530 = vunpack.c.h.b16 %v134
    %v531 = vunpack.c.l.b16 %v135
    %v532 = vunpack.c.h.b16 %v135
    %v533 = vunpack.c.l.b16 %v136
    %v534 = vunpack.c.h.b16 %v136
    %v535 = vunpack.c.l.b16 %v137
    %v536 = vunpack.c.h.b16 %v137
    %v537 = vunpack.c.l.b16 %v138
    %v538 = vunpack.c.h.b16 %v138
    %v539 = vunpack.c.l.b16 %v139
    %v540 = vunpack.c.h.b16 %v139
    %v541 = vunpack.c.l.b16 %v140
    %v542 = vunpack.c.h.b16 %v140
    %v543 = vunpack.c.l.b16 %v141
    %v544 = vunpack.c.h.b16 %v141
    %v545 = vunpack.c.l.b16 %v142
    %v546 = vunpack.c.h.b16 %v142
    %v547 = vunpack.c.l.b16 %v143
    %v548 = vunpack.c.h.b16 %v143
    %v549 = vunpack.c.l.b16 %v144
    %v550 = vunpack.c.h.b16 %v144
    %v551 = vunpack.c.l.b16 %v145
    %v552 = vunpack.c.h.b16 %v145
    %v553 = vunpack.c.l.b16 %v146
    %v554 = vunpack.c.h.b16 %v146
    %v555 = vunpack.c.l.b16 %v147
    %v556 = vunpack.c.h.b16 %v147
    %v557 = vunpack.c.l.b16 %v148
    %v558 = vunpack.c.h.b16 %v148
    %v559 = vunpack.c.l.b16 %v149
    %v560 = vunpack.c.h.b16 %v149
    %v561 = vunpack.c.l.b16 %v150
    %v562 = vunpack.c.h.b16 %v150
    %v563 = vunpack.c.l.b16 %v151
    %v564 = vunpack.c.h.b16 %v151
    %v565 = vunpack.c.l.b16 %v152
    %v566 = vunpack.c.h.b16 %v152
    %v567 = vpack.c.b16 %v315, %v311
    %v568 = vpack.c.b16 %v316, %v312
    %v569 = vpack.c.b16 %v317, %v313
    %v570 = vpack.c.b16 %v318, %v314
    %v571 = vpack.c.b16 %v323, %v319
    %v572 = vpack.c.b16 %v324, %v320
    %v573 = vpack.c.b16 %v325, %v321
    %v574 = vpack.c.b16 %v326, %v322
    %v575 = vpack.c.b16 %v331, %v327
    %v576 = vpack.c.b16 %v332, %v328
    %v577 = vpack.c.b16 %v333, %v329
    %v578 = vpack.c.b16 %v334, %v330
    %v579 = vpack.c.b16 %v339, %v335
    %v580 = vpack.c.b16 %v340, %v336
    %v581 = vpack.c.b16 %v341, %v337
    %v582 = vpack.c.b16 %v342, %v338
    %v583 = vpack.c.b16 %v347, %v343
    %v584 = vpack.c.b16 %v348, %v344
    %v585 = vpack.c.b16 %v349, %v345
    %v586 = vpack.c.b16 %v350, %v346
    %v587 = vpack.c.b16 %v355, %v351
    %v588 = vpack.c.b16 %v356, %v352
    %v589 = vpack.c.b16 %v357, %v353
    %v590 = vpack.c.b16 %v358, %v354
    %v591 = vpack.c.b16 %v363, %v359
    %v592 = vpack.c.b16 %v364, %v360
    %v593 = vpack.c.b16 %v365, %v361
    %v594 = vpack.c.b16 %v366, %v362
    %v595 = vpack.c.b16 %v371, %v367
    %v596 = vpack.c.b16 %v372, %v368
    %v597 = vpack.c.b16 %v373, %v369
    %v598 = vpack.c.b16 %v374, %v370
    %v599 = vpack.c.b16 %v379, %v375
    %v600 = vpack.c.b16 %v380, %v376
    %v601 = vpack.c.b16 %v381, %v377
    %v602 = vpack.c.b16 %v382, %v378
    %v603 = vpack.c.b16 %v387, %v383
    %v604 = vpack.c.b16 %v388, %v384
    %v605 = vpack.c.b16 %v389, %v385
    %v606 = vpack.c.b16 %v390, %v386
    %v607 = vpack.c.b16 %v395, %v391
    %v608 = vpack.c.b16 %v396, %v392
    %v609 = vpack.c.b16 %v397, %v393
    %v610 = vpack.c.b16 %v398, %v394
    %v611 = vpack.c.b16 %v403, %v399
    %v612 = vpack.c.b16 %v404, %v400
    %v613 = vpack.c.b16 %v405, %v401
    %v614 = vpack.c.b16 %v406, %v402
    %v615 = vpack.c.b16 %v411, %v407
    %v616 = vpack.c.b16 %v412, %v408
    %v617 = vpack.c.b16 %v413, %v409
    %v618 = vpack.c.b16 %v414, %v410
    %v619 = vpack.c.b16 %v419, %v415
    %v620 = vpack.c.b16 %v420, %v416
    %v621 = vpack.c.b16 %v421, %v417
    %v622 = vpack.c.b16 %v422, %v418
    %v623 = vpack.c.b16 %v427, %v423
    %v624 = vpack.c.b16 %v428, %v424
    %v625 = vpack.c.b16 %v429, %v425
    %v626 = vpack.c.b16 %v430, %v426
    %v627 = vpack.c.b16 %v435, %v431
    %v628 = vpack.c.b16 %v436, %v432
    %v629 = vpack.c.b16 %v437, %v433
    %v630 = vpack.c.b16 %v438, %v434
    %v631 = vpack.c.b16 %v443, %v439
    %v632 = vpack.c.b16 %v444, %v440
    %v633 = vpack.c.b16 %v445, %v441
    %v634 = vpack.c.b16 %v446, %v442
    %v635 = vpack.c.b16 %v451, %v447
    %v636 = vpack.c.b16 %v452, %v448
    %v637 = vpack.c.b16 %v453, %v449
    %v638 = vpack.c.b16 %v454, %v450
    %v639 = vpack.c.b16 %v459, %v455
    %v640 = vpack.c.b16 %v460, %v456
    %v641 = vpack.c.b16 %v461, %v457
    %v642 = vpack.c.b16 %v462, %v458
    %v643 = vpack.c.b16 %v467, %v463
    %v644 = vpack.c.b16 %v468, %v464
    %v645 = vpack.c.b16 %v469, %v465
    %v646 = vpack.c.b16 %v470, %v466
    %v647 = vpack.c.b16 %v475, %v471
    %v648 = vpack.c.b16 %v476, %v472
    %v649 = vpack.c.b16 %v477, %v473
    %v650 = vpack.c.b16 %v478, %v474
    %v651 = vpack.c.b16 %v483, %v479
    %v652 = vpack.c.b16 %v484, %v480
    %v653 = vpack.c.b16 %v485, %v481
    %v654 = vpack.c.b16 %v486, %v482
    %v655 = vpack.c.b16 %v491, %v487
    %v656 = vpack.c.b16 %v492, %v488
    %v657 = vpack.c.b16 %v493, %v489
    %v658 = vpack.c.b16 %v494, %v490
    %v659 = vpack.c.b16 %v499, %v495
    %v660 = vpack.c.b16 %v500, %v496
    %v661 = vpack.c.b16 %v501, %v497
    %v662 = vpack.c.b16 %v502, %v498
    %v663 = vpack.c.b16 %v507, %v503
    %v664 = vpack.c.b16 %v508, %v504
    %v665 = vpack.c.b16 %v509, %v505
    %v666 = vpack.c.b16 %v510, %v506
    %v667 = vpack.c.b16 %v515, %v511
    %v668 = vpack.c.b16 %v516, %v512
    %v669 = vpack.c.b16 %v517, %v513
    %v670 = vpack.c.b16 %v518, %v514
    %v671 = vpack.c.b16 %v523, %v519
    %v672 = vpack.c.b16 %v524, %v520
    %v673 = vpack.c.b16 %v525, %v521
    %v674 = vpack.c.b16 %v526, %v522
    %v675 = vpack.c.b16 %v531, %v527
    %v676 = vpack.c.b16 %v532, %v528
    %v677 = vpack.c.b16 %v533, %v529
    %v678 = vpack.c.b16 %v534, %v530
    %v679 = vpack.c.b16 %v539, %v535
    %v680 = vpack.c.b16 %v540, %v536
    %v681 = vpack.c.b16 %v541, %v537
    %v682 = vpack.c.b16 %v542, %v538
    %v683 = vpack.c.b16 %v547, %v543
    %v684 = vpack.c.b16 %v548, %v544
    %v685 = vpack.c.b16 %v549, %v545
    %v686 = vpack.c.b16 %v550, %v546
    %v687 = vpack.c.b16 %v555, %v551
    %v688 = vpack.c.b16 %v556, %v552
    %v689 = vpack.c.b16 %v557, %v553
    %v690 = vpack.c.b16 %v558, %v554
    %v691 = vpack.c.b16 %v563, %v559
    %v692 = vpack.c.b16 %v564, %v560
    %v693 = vpack.c.b16 %v565, %v561
    %v694 = vpack.c.b16 %v566, %v562
    %823 = vmatpush.bf16.msra.mxu0 %v595
    %824 = vmatpush.bf16.msra.mxu0 %v591
    %825 = vmatpush.bf16.msra.mxu0 %v587
    %826 = vmatpush.bf16.msra.mxu0 %v583
    %827 = vmatpush.bf16.msra.mxu0 %v579
    %828 = vmatpush.bf16.msra.mxu0 %v575
    %829 = vmatpush.bf16.msra.mxu0 %v571
    %830 = vmatpush.bf16.msra.mxu0 %v567
    %831 = vmatmul.bf16.gmra.mxu0 %v175
    %v832 = vpop.f32.mrf.mxu0
    %v833 = vadd.f32 %v155, %v832
    %v834 = vpop.f32.mrf.mxu0
    %v835 = vadd.f32 %v155, %v834
    %836 = vdwg.mxu0
    %837 = vmatpush.bf16.msra.mxu0 %v627
    %838 = vmatpush.bf16.msra.mxu0 %v623
    %839 = vmatpush.bf16.msra.mxu0 %v619
    %840 = vmatpush.bf16.msra.mxu0 %v615
    %841 = vmatpush.bf16.msra.mxu0 %v611
    %842 = vmatpush.bf16.msra.mxu0 %v607
    %843 = vmatpush.bf16.msra.mxu0 %v603
    %844 = vmatpush.bf16.msra.mxu0 %v599
    %845 = vmatmul.bf16.gmra.mxu0 %v176
    %v846 = vpop.f32.mrf.mxu0
    %v847 = vadd.f32 %v833, %v846
    %v848 = vpop.f32.mrf.mxu0
    %v849 = vadd.f32 %v835, %v848
    %850 = vdwg.mxu0
    %851 = vmatpush.bf16.msra.mxu0 %v659
    %852 = vmatpush.bf16.msra.mxu0 %v655
    %853 = vmatpush.bf16.msra.mxu0 %v651
    %854 = vmatpush.bf16.msra.mxu0 %v647
    %855 = vmatpush.bf16.msra.mxu0 %v643
    %856 = vmatpush.bf16.msra.mxu0 %v639
    %857 = vmatpush.bf16.msra.mxu0 %v635
    %858 = vmatpush.bf16.msra.mxu0 %v631
    %859 = vmatmul.bf16.gmra.mxu0 %v177
    %v860 = vpop.f32.mrf.mxu0
    %v861 = vadd.f32 %v847, %v860
    %v862 = vpop.f32.mrf.mxu0
    %v863 = vadd.f32 %v849, %v862
    %864 = vdwg.mxu0
    %865 = vmatpush.bf16.msra.mxu0 %v691
    %866 = vmatpush.bf16.msra.mxu0 %v687
    %867 = vmatpush.bf16.msra.mxu0 %v683
    %868 = vmatpush.bf16.msra.mxu0 %v679
    %869 = vmatpush.bf16.msra.mxu0 %v675
    %870 = vmatpush.bf16.msra.mxu0 %v671
    %871 = vmatpush.bf16.msra.mxu0 %v667
    %872 = vmatpush.bf16.msra.mxu0 %v663
    %873 = vmatmul.bf16.gmra.mxu0 %v178
    %v874 = vpop.f32.mrf.mxu0
    %v875 = vadd.f32 %v861, %v874
    %v876 = vpop.f32.mrf.mxu0
    %v877 = vadd.f32 %v863, %v876
    %878 = vdwg.mxu0
    %879 = vmatpush.bf16.msra.mxu0 %v596
    %880 = vmatpush.bf16.msra.mxu0 %v592
    %881 = vmatpush.bf16.msra.mxu0 %v588
    %882 = vmatpush.bf16.msra.mxu0 %v584
    %883 = vmatpush.bf16.msra.mxu0 %v580
    %884 = vmatpush.bf16.msra.mxu0 %v576
    %885 = vmatpush.bf16.msra.mxu0 %v572
    %886 = vmatpush.bf16.msra.mxu0 %v568
    %887 = vmatmul.bf16.gmra.mxu0 %v175
    %v888 = vpop.f32.mrf.mxu0
    %v889 = vadd.f32 %v156, %v888
    %v890 = vpop.f32.mrf.mxu0
    %v891 = vadd.f32 %v156, %v890
    %892 = vdwg.mxu0
    %893 = vmatpush.bf16.msra.mxu0 %v628
    %894 = vmatpush.bf16.msra.mxu0 %v624
    %895 = vmatpush.bf16.msra.mxu0 %v620
    %896 = vmatpush.bf16.msra.mxu0 %v616
    %897 = vmatpush.bf16.msra.mxu0 %v612
    %898 = vmatpush.bf16.msra.mxu0 %v608
    %899 = vmatpush.bf16.msra.mxu0 %v604
    %900 = vmatpush.bf16.msra.mxu0 %v600
    %901 = vmatmul.bf16.gmra.mxu0 %v176
    %v902 = vpop.f32.mrf.mxu0
    %v903 = vadd.f32 %v889, %v902
    %v904 = vpop.f32.mrf.mxu0
    %v905 = vadd.f32 %v891, %v904
    %906 = vdwg.mxu0
    %907 = vmatpush.bf16.msra.mxu0 %v660
    %908 = vmatpush.bf16.msra.mxu0 %v656
    %909 = vmatpush.bf16.msra.mxu0 %v652
    %910 = vmatpush.bf16.msra.mxu0 %v648
    %911 = vmatpush.bf16.msra.mxu0 %v644
    %912 = vmatpush.bf16.msra.mxu0 %v640
    %913 = vmatpush.bf16.msra.mxu0 %v636
    %914 = vmatpush.bf16.msra.mxu0 %v632
    %915 = vmatmul.bf16.gmra.mxu0 %v177
    %v916 = vpop.f32.mrf.mxu0
    %v917 = vadd.f32 %v903, %v916
    %v918 = vpop.f32.mrf.mxu0
    %v919 = vadd.f32 %v905, %v918
    %920 = vdwg.mxu0
    %921 = vmatpush.bf16.msra.mxu0 %v692
    %922 = vmatpush.bf16.msra.mxu0 %v688
    %923 = vmatpush.bf16.msra.mxu0 %v684
    %924 = vmatpush.bf16.msra.mxu0 %v680
    %925 = vmatpush.bf16.msra.mxu0 %v676
    %926 = vmatpush.bf16.msra.mxu0 %v672
    %927 = vmatpush.bf16.msra.mxu0 %v668
    %928 = vmatpush.bf16.msra.mxu0 %v664
    %929 = vmatmul.bf16.gmra.mxu0 %v178
    %v930 = vpop.f32.mrf.mxu0
    %v931 = vadd.f32 %v917, %v930
    %v932 = vpop.f32.mrf.mxu0
    %v933 = vadd.f32 %v919, %v932
    %934 = vdwg.mxu0
    %935 = vmatpush.bf16.msra.mxu0 %v597
    %936 = vmatpush.bf16.msra.mxu0 %v593
    %937 = vmatpush.bf16.msra.mxu0 %v589
    %938 = vmatpush.bf16.msra.mxu0 %v585
    %939 = vmatpush.bf16.msra.mxu0 %v581
    %940 = vmatpush.bf16.msra.mxu0 %v577
    %941 = vmatpush.bf16.msra.mxu0 %v573
    %942 = vmatpush.bf16.msra.mxu0 %v569
    %943 = vmatmul.bf16.gmra.mxu0 %v175
    %v944 = vpop.f32.mrf.mxu0
    %v945 = vadd.f32 %v157, %v944
    %v946 = vpop.f32.mrf.mxu0
    %v947 = vadd.f32 %v157, %v946
    %948 = vdwg.mxu0
    %949 = vmatpush.bf16.msra.mxu0 %v629
    %950 = vmatpush.bf16.msra.mxu0 %v625
    %951 = vmatpush.bf16.msra.mxu0 %v621
    %952 = vmatpush.bf16.msra.mxu0 %v617
    %953 = vmatpush.bf16.msra.mxu0 %v613
    %954 = vmatpush.bf16.msra.mxu0 %v609
    %955 = vmatpush.bf16.msra.mxu0 %v605
    %956 = vmatpush.bf16.msra.mxu0 %v601
    %957 = vmatmul.bf16.gmra.mxu0 %v176
    %v958 = vpop.f32.mrf.mxu0
    %v959 = vadd.f32 %v945, %v958
    %v960 = vpop.f32.mrf.mxu0
    %v961 = vadd.f32 %v947, %v960
    %962 = vdwg.mxu0
    %963 = vmatpush.bf16.msra.mxu0 %v661
    %964 = vmatpush.bf16.msra.mxu0 %v657
    %965 = vmatpush.bf16.msra.mxu0 %v653
    %966 = vmatpush.bf16.msra.mxu0 %v649
    %967 = vmatpush.bf16.msra.mxu0 %v645
    %968 = vmatpush.bf16.msra.mxu0 %v641
    %969 = vmatpush.bf16.msra.mxu0 %v637
    %970 = vmatpush.bf16.msra.mxu0 %v633
    %971 = vmatmul.bf16.gmra.mxu0 %v177
    %v972 = vpop.f32.mrf.mxu0
    %v973 = vadd.f32 %v959, %v972
    %v974 = vpop.f32.mrf.mxu0
    %v975 = vadd.f32 %v961, %v974
    %976 = vdwg.mxu0
    %977 = vmatpush.bf16.msra.mxu0 %v693
    %978 = vmatpush.bf16.msra.mxu0 %v689
    %979 = vmatpush.bf16.msra.mxu0 %v685
    %980 = vmatpush.bf16.msra.mxu0 %v681
    %981 = vmatpush.bf16.msra.mxu0 %v677
    %982 = vmatpush.bf16.msra.mxu0 %v673
    %983 = vmatpush.bf16.msra.mxu0 %v669
    %984 = vmatpush.bf16.msra.mxu0 %v665
    %985 = vmatmul.bf16.gmra.mxu0 %v178
    %v986 = vpop.f32.mrf.mxu0
    %v987 = vadd.f32 %v973, %v986
    %v988 = vpop.f32.mrf.mxu0
    %v989 = vadd.f32 %v975, %v988
    %990 = vdwg.mxu0
    %991 = vmatpush.bf16.msra.mxu0 %v598
    %992 = vmatpush.bf16.msra.mxu0 %v594
    %993 = vmatpush.bf16.msra.mxu0 %v590
    %994 = vmatpush.bf16.msra.mxu0 %v586
    %995 = vmatpush.bf16.msra.mxu0 %v582
    %996 = vmatpush.bf16.msra.mxu0 %v578
    %997 = vmatpush.bf16.msra.mxu0 %v574
    %998 = vmatpush.bf16.msra.mxu0 %v570
    %999 = vmatmul.bf16.gmra.mxu0 %v175
    %v1000 = vpop.f32.mrf.mxu0
    %v1001 = vadd.f32 %v158, %v1000
    %v1002 = vpop.f32.mrf.mxu0
    %v1003 = vadd.f32 %v158, %v1002
    %1004 = vdwg.mxu0
    %1005 = vmatpush.bf16.msra.mxu0 %v630
    %1006 = vmatpush.bf16.msra.mxu0 %v626
    %1007 = vmatpush.bf16.msra.mxu0 %v622
    %1008 = vmatpush.bf16.msra.mxu0 %v618
    %1009 = vmatpush.bf16.msra.mxu0 %v614
    %1010 = vmatpush.bf16.msra.mxu0 %v610
    %1011 = vmatpush.bf16.msra.mxu0 %v606
    %1012 = vmatpush.bf16.msra.mxu0 %v602
    %1013 = vmatmul.bf16.gmra.mxu0 %v176
    %v1014 = vpop.f32.mrf.mxu0
    %v1015 = vadd.f32 %v1001, %v1014
    %v1016 = vpop.f32.mrf.mxu0
    %v1017 = vadd.f32 %v1003, %v1016
    %1018 = vdwg.mxu0
    %1019 = vmatpush.bf16.msra.mxu0 %v662
    %1020 = vmatpush.bf16.msra.mxu0 %v658
    %1021 = vmatpush.bf16.msra.mxu0 %v654
    %1022 = vmatpush.bf16.msra.mxu0 %v650
    %1023 = vmatpush.bf16.msra.mxu0 %v646
    %1024 = vmatpush.bf16.msra.mxu0 %v642
    %1025 = vmatpush.bf16.msra.mxu0 %v638
    %1026 = vmatpush.bf16.msra.mxu0 %v634
    %1027 = vmatmul.bf16.gmra.mxu0 %v177
    %v1028 = vpop.f32.mrf.mxu0
    %v1029 = vadd.f32 %v1015, %v1028
    %v1030 = vpop.f32.mrf.mxu0
    %v1031 = vadd.f32 %v1017, %v1030
    %1032 = vdwg.mxu0
    %1033 = vmatpush.bf16.msra.mxu0 %v694
    %1034 = vmatpush.bf16.msra.mxu0 %v690
    %1035 = vmatpush.bf16.msra.mxu0 %v686
    %1036 = vmatpush.bf16.msra.mxu0 %v682
    %1037 = vmatpush.bf16.msra.mxu0 %v678
    %1038 = vmatpush.bf16.msra.mxu0 %v674
    %1039 = vmatpush.bf16.msra.mxu0 %v670
    %1040 = vmatpush.bf16.msra.mxu0 %v666
    %1041 = vmatmul.bf16.gmra.mxu0 %v178
    %v1042 = vpop.f32.mrf.mxu0
    %v1043 = vadd.f32 %v1029, %v1042
    %v1044 = vpop.f32.mrf.mxu0
    %v1045 = vadd.f32 %v1031, %v1044
    %1046 = vdwg.mxu0
    %v1047 = vmul.f32 %v875, 0.01
    %v1048 = vmul.f32 %v931, 0.01
    %v1049 = vmul.f32 %v987, 0.01
    %v1050 = vmul.f32 %v1043, 0.01
    %v1051 = vmul.f32 %v877, 0.01
    %v1052 = vmul.f32 %v933, 0.01
    %v1053 = vmul.f32 %v989, 0.01
    %v1054 = vmul.f32 %v1045, 0.01
    %v1055 = vmax.f32 %v875, %v1047
    %v1056 = vmax.f32 %v931, %v1048
    %v1057 = vmax.f32 %v987, %v1049
    %v1058 = vmax.f32 %v1043, %v1050
    %v1059 = vmax.f32 %v877, %v1051
    %v1060 = vmax.f32 %v933, %v1052
    %v1061 = vmax.f32 %v989, %v1053
    %v1062 = vmax.f32 %v1045, %v1054
    %v1063 = vpack.c.bf16 %v1059, %v1055
    %v1064 = vpack.c.bf16 %v1060, %v1056
    %v1065 = vpack.c.bf16 %v1061, %v1057
    %v1066 = vpack.c.bf16 %v1062, %v1058
    %v1067 = vld [vmem:[%s3] sm:$0xff]
    %v1068 = vld [vmem:[%s3 + $0x8] sm:$0xff]
    %v1069 = vld [vmem:[%s3 + $0x10] sm:$0xff]
    %v1070 = vld [vmem:[%s3 + $0x18] sm:$0xff]
    %v1071 = vld [vmem:[%s3 + $0x20] sm:$0xff]
    %v1072 = vld [vmem:[%s3 + $0x28] sm:$0xff]
    %v1073 = vld [vmem:[%s3 + $0x30] sm:$0xff]
    %v1074 = vld [vmem:[%s3 + $0x38] sm:$0xff]
    %v1075 = vld [vmem:[%s3 + $0x40] sm:$0xff]
    %v1076 = vld [vmem:[%s3 + $0x48] sm:$0xff]
    %v1077 = vld [vmem:[%s3 + $0x50] sm:$0xff]
    %v1078 = vld [vmem:[%s3 + $0x58] sm:$0xff]
    %v1079 = vld [vmem:[%s3 + $0x60] sm:$0xff]
    %v1080 = vld [vmem:[%s3 + $0x68] sm:$0xff]
    %v1081 = vld [vmem:[%s3 + $0x70] sm:$0xff]
    %v1082 = vld [vmem:[%s3 + $0x78] sm:$0xff]
    %v1083 = vld [vmem:[%s3 + $0x80] sm:$0xff]
    %v1084 = vld [vmem:[%s3 + $0x88] sm:$0xff]
    %v1085 = vld [vmem:[%s3 + $0x90] sm:$0xff]
    %v1086 = vld [vmem:[%s3 + $0x98] sm:$0xff]
    %v1087 = vld [vmem:[%s3 + $0xa0] sm:$0xff]
    %v1088 = vld [vmem:[%s3 + $0xa8] sm:$0xff]
    %v1089 = vld [vmem:[%s3 + $0xb0] sm:$0xff]
    %v1090 = vld [vmem:[%s3 + $0xb8] sm:$0xff]
    %v1091 = vld [vmem:[%s3 + $0xc0] sm:$0xff]
    %v1092 = vld [vmem:[%s3 + $0xc8] sm:$0xff]
    %v1093 = vld [vmem:[%s3 + $0xd0] sm:$0xff]
    %v1094 = vld [vmem:[%s3 + $0xd8] sm:$0xff]
    %v1095 = vld [vmem:[%s3 + $0xe0] sm:$0xff]
    %v1096 = vld [vmem:[%s3 + $0xe8] sm:$0xff]
    %v1097 = vld [vmem:[%s3 + $0xf0] sm:$0xff]
    %v1098 = vld [vmem:[%s3 + $0xf8] sm:$0xff]
    %v1099 = vld [vmem:[%s3 + $0x100] sm:$0xff]
    %v1100 = vld [vmem:[%s3 + $0x108] sm:$0xff]
    %v1101 = vld [vmem:[%s3 + $0x110] sm:$0xff]
    %v1102 = vld [vmem:[%s3 + $0x118] sm:$0xff]
    %v1103 = vld [vmem:[%s3 + $0x120] sm:$0xff]
    %v1104 = vld [vmem:[%s3 + $0x128] sm:$0xff]
    %v1105 = vld [vmem:[%s3 + $0x130] sm:$0xff]
    %v1106 = vld [vmem:[%s3 + $0x138] sm:$0xff]
    %v1107 = vld [vmem:[%s3 + $0x140] sm:$0xff]
    %v1108 = vld [vmem:[%s3 + $0x148] sm:$0xff]
    %v1109 = vld [vmem:[%s3 + $0x150] sm:$0xff]
    %v1110 = vld [vmem:[%s3 + $0x158] sm:$0xff]
    %v1111 = vld [vmem:[%s3 + $0x160] sm:$0xff]
    %v1112 = vld [vmem:[%s3 + $0x168] sm:$0xff]
    %v1113 = vld [vmem:[%s3 + $0x170] sm:$0xff]
    %v1114 = vld [vmem:[%s3 + $0x178] sm:$0xff]
    %v1115 = vld [vmem:[%s3 + $0x180] sm:$0xff]
    %v1116 = vld [vmem:[%s3 + $0x188] sm:$0xff]
    %v1117 = vld [vmem:[%s3 + $0x190] sm:$0xff]
    %v1118 = vld [vmem:[%s3 + $0x198] sm:$0xff]
    %v1119 = vld [vmem:[%s3 + $0x1a0] sm:$0xff]
    %v1120 = vld [vmem:[%s3 + $0x1a8] sm:$0xff]
    %v1121 = vld [vmem:[%s3 + $0x1b0] sm:$0xff]
    %v1122 = vld [vmem:[%s3 + $0x1b8] sm:$0xff]
    %v1123 = vld [vmem:[%s3 + $0x1c0] sm:$0xff]
    %v1124 = vld [vmem:[%s3 + $0x1c8] sm:$0xff]
    %v1125 = vld [vmem:[%s3 + $0x1d0] sm:$0xff]
    %v1126 = vld [vmem:[%s3 + $0x1d8] sm:$0xff]
    %v1127 = vld [vmem:[%s3 + $0x1e0] sm:$0xff]
    %v1128 = vld [vmem:[%s3 + $0x1e8] sm:$0xff]
    %v1129 = vld [vmem:[%s3 + $0x1f0] sm:$0xff]
    %v1130 = vld [vmem:[%s3 + $0x1f8] sm:$0xff]
    %v1131 = vld [vmem:[%s3 + $0x200] sm:$0xff]
    %v1132 = vld [vmem:[%s3 + $0x208] sm:$0xff]
    %v1133 = vld [vmem:[%s3 + $0x210] sm:$0xff]
    %v1134 = vld [vmem:[%s3 + $0x218] sm:$0xff]
    %v1135 = vld [vmem:[%s3 + $0x220] sm:$0xff]
    %v1136 = vld [vmem:[%s3 + $0x228] sm:$0xff]
    %v1137 = vld [vmem:[%s3 + $0x230] sm:$0xff]
    %v1138 = vld [vmem:[%s3 + $0x238] sm:$0xff]
    %v1139 = vld [vmem:[%s3 + $0x240] sm:$0xff]
    %v1140 = vld [vmem:[%s3 + $0x248] sm:$0xff]
    %v1141 = vld [vmem:[%s3 + $0x250] sm:$0xff]
    %v1142 = vld [vmem:[%s3 + $0x258] sm:$0xff]
    %v1143 = vld [vmem:[%s3 + $0x260] sm:$0xff]
    %v1144 = vld [vmem:[%s3 + $0x268] sm:$0xff]
    %v1145 = vld [vmem:[%s3 + $0x270] sm:$0xff]
    %v1146 = vld [vmem:[%s3 + $0x278] sm:$0xff]
    %v1147 = vld [vmem:[%s3 + $0x280] sm:$0xff]
    %v1148 = vld [vmem:[%s3 + $0x288] sm:$0xff]
    %v1149 = vld [vmem:[%s3 + $0x290] sm:$0xff]
    %v1150 = vld [vmem:[%s3 + $0x298] sm:$0xff]
    %v1151 = vld [vmem:[%s3 + $0x2a0] sm:$0xff]
    %v1152 = vld [vmem:[%s3 + $0x2a8] sm:$0xff]
    %v1153 = vld [vmem:[%s3 + $0x2b0] sm:$0xff]
    %v1154 = vld [vmem:[%s3 + $0x2b8] sm:$0xff]
    %v1155 = vld [vmem:[%s3 + $0x2c0] sm:$0xff]
    %v1156 = vld [vmem:[%s3 + $0x2c8] sm:$0xff]
    %v1157 = vld [vmem:[%s3 + $0x2d0] sm:$0xff]
    %v1158 = vld [vmem:[%s3 + $0x2d8] sm:$0xff]
    %v1159 = vld [vmem:[%s3 + $0x2e0] sm:$0xff]
    %v1160 = vld [vmem:[%s3 + $0x2e8] sm:$0xff]
    %v1161 = vld [vmem:[%s3 + $0x2f0] sm:$0xff]
    %v1162 = vld [vmem:[%s3 + $0x2f8] sm:$0xff]
    %v1163 = vld [vmem:[%s3 + $0x300] sm:$0xff]
    %v1164 = vld [vmem:[%s3 + $0x308] sm:$0xff]
    %v1165 = vld [vmem:[%s3 + $0x310] sm:$0xff]
    %v1166 = vld [vmem:[%s3 + $0x318] sm:$0xff]
    %v1167 = vld [vmem:[%s3 + $0x320] sm:$0xff]
    %v1168 = vld [vmem:[%s3 + $0x328] sm:$0xff]
    %v1169 = vld [vmem:[%s3 + $0x330] sm:$0xff]
    %v1170 = vld [vmem:[%s3 + $0x338] sm:$0xff]
    %v1171 = vld [vmem:[%s3 + $0x340] sm:$0xff]
    %v1172 = vld [vmem:[%s3 + $0x348] sm:$0xff]
    %v1173 = vld [vmem:[%s3 + $0x350] sm:$0xff]
    %v1174 = vld [vmem:[%s3 + $0x358] sm:$0xff]
    %v1175 = vld [vmem:[%s3 + $0x360] sm:$0xff]
    %v1176 = vld [vmem:[%s3 + $0x368] sm:$0xff]
    %v1177 = vld [vmem:[%s3 + $0x370] sm:$0xff]
    %v1178 = vld [vmem:[%s3 + $0x378] sm:$0xff]
    %v1179 = vld [vmem:[%s3 + $0x380] sm:$0xff]
    %v1180 = vld [vmem:[%s3 + $0x388] sm:$0xff]
    %v1181 = vld [vmem:[%s3 + $0x390] sm:$0xff]
    %v1182 = vld [vmem:[%s3 + $0x398] sm:$0xff]
    %v1183 = vld [vmem:[%s3 + $0x3a0] sm:$0xff]
    %v1184 = vld [vmem:[%s3 + $0x3a8] sm:$0xff]
    %v1185 = vld [vmem:[%s3 + $0x3b0] sm:$0xff]
    %v1186 = vld [vmem:[%s3 + $0x3b8] sm:$0xff]
    %v1187 = vld [vmem:[%s3 + $0x3c0] sm:$0xff]
    %v1188 = vld [vmem:[%s3 + $0x3c8] sm:$0xff]
    %v1189 = vld [vmem:[%s3 + $0x3d0] sm:$0xff]
    %v1190 = vld [vmem:[%s3 + $0x3d8] sm:$0xff]
    %v1191 = vld [vmem:[%s3 + $0x3e0] sm:$0xff]
    %v1192 = vld [vmem:[%s3 + $0x3e8] sm:$0xff]
    %v1193 = vld [vmem:[%s3 + $0x3f0] sm:$0xff]
    %v1194 = vld [vmem:[%s3 + $0x3f8] sm:$0xff]
    %v1195 = vld [vmem:[%s4] sm:$0xf]
    %v1197 = vperm.slane %v1195, 0
    %v1198 = vperm.slane %v1195, 1
    %v1199 = vperm.slane %v1195, 2
    %v1200 = vperm.slane %v1195, 3
    %v1333 = vunpack.c.l.b16 %v1067
    %v1334 = vunpack.c.h.b16 %v1067
    %v1335 = vunpack.c.l.b16 %v1068
    %v1336 = vunpack.c.h.b16 %v1068
    %v1337 = vunpack.c.l.b16 %v1069
    %v1338 = vunpack.c.h.b16 %v1069
    %v1339 = vunpack.c.l.b16 %v1070
    %v1340 = vunpack.c.h.b16 %v1070
    %v1341 = vunpack.c.l.b16 %v1071
    %v1342 = vunpack.c.h.b16 %v1071
    %v1343 = vunpack.c.l.b16 %v1072
    %v1344 = vunpack.c.h.b16 %v1072
    %v1345 = vunpack.c.l.b16 %v1073
    %v1346 = vunpack.c.h.b16 %v1073
    %v1347 = vunpack.c.l.b16 %v1074
    %v1348 = vunpack.c.h.b16 %v1074
    %v1349 = vunpack.c.l.b16 %v1075
    %v1350 = vunpack.c.h.b16 %v1075
    %v1351 = vunpack.c.l.b16 %v1076
    %v1352 = vunpack.c.h.b16 %v1076
    %v1353 = vunpack.c.l.b16 %v1077
    %v1354 = vunpack.c.h.b16 %v1077
    %v1355 = vunpack.c.l.b16 %v1078
    %v1356 = vunpack.c.h.b16 %v1078
    %v1357 = vunpack.c.l.b16 %v1079
    %v1358 = vunpack.c.h.b16 %v1079
    %v1359 = vunpack.c.l.b16 %v1080
    %v1360 = vunpack.c.h.b16 %v1080
    %v1361 = vunpack.c.l.b16 %v1081
    %v1362 = vunpack.c.h.b16 %v1081
    %v1363 = vunpack.c.l.b16 %v1082
    %v1364 = vunpack.c.h.b16 %v1082
    %v1365 = vunpack.c.l.b16 %v1083
    %v1366 = vunpack.c.h.b16 %v1083
    %v1367 = vunpack.c.l.b16 %v1084
    %v1368 = vunpack.c.h.b16 %v1084
    %v1369 = vunpack.c.l.b16 %v1085
    %v1370 = vunpack.c.h.b16 %v1085
    %v1371 = vunpack.c.l.b16 %v1086
    %v1372 = vunpack.c.h.b16 %v1086
    %v1373 = vunpack.c.l.b16 %v1087
    %v1374 = vunpack.c.h.b16 %v1087
    %v1375 = vunpack.c.l.b16 %v1088
    %v1376 = vunpack.c.h.b16 %v1088
    %v1377 = vunpack.c.l.b16 %v1089
    %v1378 = vunpack.c.h.b16 %v1089
    %v1379 = vunpack.c.l.b16 %v1090
    %v1380 = vunpack.c.h.b16 %v1090
    %v1381 = vunpack.c.l.b16 %v1091
    %v1382 = vunpack.c.h.b16 %v1091
    %v1383 = vunpack.c.l.b16 %v1092
    %v1384 = vunpack.c.h.b16 %v1092
    %v1385 = vunpack.c.l.b16 %v1093
    %v1386 = vunpack.c.h.b16 %v1093
    %v1387 = vunpack.c.l.b16 %v1094
    %v1388 = vunpack.c.h.b16 %v1094
    %v1389 = vunpack.c.l.b16 %v1095
    %v1390 = vunpack.c.h.b16 %v1095
    %v1391 = vunpack.c.l.b16 %v1096
    %v1392 = vunpack.c.h.b16 %v1096
    %v1393 = vunpack.c.l.b16 %v1097
    %v1394 = vunpack.c.h.b16 %v1097
    %v1395 = vunpack.c.l.b16 %v1098
    %v1396 = vunpack.c.h.b16 %v1098
    %v1397 = vunpack.c.l.b16 %v1099
    %v1398 = vunpack.c.h.b16 %v1099
    %v1399 = vunpack.c.l.b16 %v1100
    %v1400 = vunpack.c.h.b16 %v1100
    %v1401 = vunpack.c.l.b16 %v1101
    %v1402 = vunpack.c.h.b16 %v1101
    %v1403 = vunpack.c.l.b16 %v1102
    %v1404 = vunpack.c.h.b16 %v1102
    %v1405 = vunpack.c.l.b16 %v1103
    %v1406 = vunpack.c.h.b16 %v1103
    %v1407 = vunpack.c.l.b16 %v1104
    %v1408 = vunpack.c.h.b16 %v1104
    %v1409 = vunpack.c.l.b16 %v1105
    %v1410 = vunpack.c.h.b16 %v1105
    %v1411 = vunpack.c.l.b16 %v1106
    %v1412 = vunpack.c.h.b16 %v1106
    %v1413 = vunpack.c.l.b16 %v1107
    %v1414 = vunpack.c.h.b16 %v1107
    %v1415 = vunpack.c.l.b16 %v1108
    %v1416 = vunpack.c.h.b16 %v1108
    %v1417 = vunpack.c.l.b16 %v1109
    %v1418 = vunpack.c.h.b16 %v1109
    %v1419 = vunpack.c.l.b16 %v1110
    %v1420 = vunpack.c.h.b16 %v1110
    %v1421 = vunpack.c.l.b16 %v1111
    %v1422 = vunpack.c.h.b16 %v1111
    %v1423 = vunpack.c.l.b16 %v1112
    %v1424 = vunpack.c.h.b16 %v1112
    %v1425 = vunpack.c.l.b16 %v1113
    %v1426 = vunpack.c.h.b16 %v1113
    %v1427 = vunpack.c.l.b16 %v1114
    %v1428 = vunpack.c.h.b16 %v1114
    %v1429 = vunpack.c.l.b16 %v1115
    %v1430 = vunpack.c.h.b16 %v1115
    %v1431 = vunpack.c.l.b16 %v1116
    %v1432 = vunpack.c.h.b16 %v1116
    %v1433 = vunpack.c.l.b16 %v1117
    %v1434 = vunpack.c.h.b16 %v1117
    %v1435 = vunpack.c.l.b16 %v1118
    %v1436 = vunpack.c.h.b16 %v1118
    %v1437 = vunpack.c.l.b16 %v1119
    %v1438 = vunpack.c.h.b16 %v1119
    %v1439 = vunpack.c.l.b16 %v1120
    %v1440 = vunpack.c.h.b16 %v1120
    %v1441 = vunpack.c.l.b16 %v1121
    %v1442 = vunpack.c.h.b16 %v1121
    %v1443 = vunpack.c.l.b16 %v1122
    %v1444 = vunpack.c.h.b16 %v1122
    %v1445 = vunpack.c.l.b16 %v1123
    %v1446 = vunpack.c.h.b16 %v1123
    %v1447 = vunpack.c.l.b16 %v1124
    %v1448 = vunpack.c.h.b16 %v1124
    %v1449 = vunpack.c.l.b16 %v1125
    %v1450 = vunpack.c.h.b16 %v1125
    %v1451 = vunpack.c.l.b16 %v1126
    %v1452 = vunpack.c.h.b16 %v1126
    %v1453 = vunpack.c.l.b16 %v1127
    %v1454 = vunpack.c.h.b16 %v1127
    %v1455 = vunpack.c.l.b16 %v1128
    %v1456 = vunpack.c.h.b16 %v1128
    %v1457 = vunpack.c.l.b16 %v1129
    %v1458 = vunpack.c.h.b16 %v1129
    %v1459 = vunpack.c.l.b16 %v1130
    %v1460 = vunpack.c.h.b16 %v1130
    %v1461 = vunpack.c.l.b16 %v1131
    %v1462 = vunpack.c.h.b16 %v1131
    %v1463 = vunpack.c.l.b16 %v1132
    %v1464 = vunpack.c.h.b16 %v1132
    %v1465 = vunpack.c.l.b16 %v1133
    %v1466 = vunpack.c.h.b16 %v1133
    %v1467 = vunpack.c.l.b16 %v1134
    %v1468 = vunpack.c.h.b16 %v1134
    %v1469 = vunpack.c.l.b16 %v1135
    %v1470 = vunpack.c.h.b16 %v1135
    %v1471 = vunpack.c.l.b16 %v1136
    %v1472 = vunpack.c.h.b16 %v1136
    %v1473 = vunpack.c.l.b16 %v1137
    %v1474 = vunpack.c.h.b16 %v1137
    %v1475 = vunpack.c.l.b16 %v1138
    %v1476 = vunpack.c.h.b16 %v1138
    %v1477 = vunpack.c.l.b16 %v1139
    %v1478 = vunpack.c.h.b16 %v1139
    %v1479 = vunpack.c.l.b16 %v1140
    %v1480 = vunpack.c.h.b16 %v1140
    %v1481 = vunpack.c.l.b16 %v1141
    %v1482 = vunpack.c.h.b16 %v1141
    %v1483 = vunpack.c.l.b16 %v1142
    %v1484 = vunpack.c.h.b16 %v1142
    %v1485 = vunpack.c.l.b16 %v1143
    %v1486 = vunpack.c.h.b16 %v1143
    %v1487 = vunpack.c.l.b16 %v1144
    %v1488 = vunpack.c.h.b16 %v1144
    %v1489 = vunpack.c.l.b16 %v1145
    %v1490 = vunpack.c.h.b16 %v1145
    %v1491 = vunpack.c.l.b16 %v1146
    %v1492 = vunpack.c.h.b16 %v1146
    %v1493 = vunpack.c.l.b16 %v1147
    %v1494 = vunpack.c.h.b16 %v1147
    %v1495 = vunpack.c.l.b16 %v1148
    %v1496 = vunpack.c.h.b16 %v1148
    %v1497 = vunpack.c.l.b16 %v1149
    %v1498 = vunpack.c.h.b16 %v1149
    %v1499 = vunpack.c.l.b16 %v1150
    %v1500 = vunpack.c.h.b16 %v1150
    %v1501 = vunpack.c.l.b16 %v1151
    %v1502 = vunpack.c.h.b16 %v1151
    %v1503 = vunpack.c.l.b16 %v1152
    %v1504 = vunpack.c.h.b16 %v1152
    %v1505 = vunpack.c.l.b16 %v1153
    %v1506 = vunpack.c.h.b16 %v1153
    %v1507 = vunpack.c.l.b16 %v1154
    %v1508 = vunpack.c.h.b16 %v1154
    %v1509 = vunpack.c.l.b16 %v1155
    %v1510 = vunpack.c.h.b16 %v1155
    %v1511 = vunpack.c.l.b16 %v1156
    %v1512 = vunpack.c.h.b16 %v1156
    %v1513 = vunpack.c.l.b16 %v1157
    %v1514 = vunpack.c.h.b16 %v1157
    %v1515 = vunpack.c.l.b16 %v1158
    %v1516 = vunpack.c.h.b16 %v1158
    %v1517 = vunpack.c.l.b16 %v1159
    %v1518 = vunpack.c.h.b16 %v1159
    %v1519 = vunpack.c.l.b16 %v1160
    %v1520 = vunpack.c.h.b16 %v1160
    %v1521 = vunpack.c.l.b16 %v1161
    %v1522 = vunpack.c.h.b16 %v1161
    %v1523 = vunpack.c.l.b16 %v1162
    %v1524 = vunpack.c.h.b16 %v1162
    %v1525 = vunpack.c.l.b16 %v1163
    %v1526 = vunpack.c.h.b16 %v1163
    %v1527 = vunpack.c.l.b16 %v1164
    %v1528 = vunpack.c.h.b16 %v1164
    %v1529 = vunpack.c.l.b16 %v1165
    %v1530 = vunpack.c.h.b16 %v1165
    %v1531 = vunpack.c.l.b16 %v1166
    %v1532 = vunpack.c.h.b16 %v1166
    %v1533 = vunpack.c.l.b16 %v1167
    %v1534 = vunpack.c.h.b16 %v1167
    %v1535 = vunpack.c.l.b16 %v1168
    %v1536 = vunpack.c.h.b16 %v1168
    %v1537 = vunpack.c.l.b16 %v1169
    %v1538 = vunpack.c.h.b16 %v1169
    %v1539 = vunpack.c.l.b16 %v1170
    %v1540 = vunpack.c.h.b16 %v1170
    %v1541 = vunpack.c.l.b16 %v1171
    %v1542 = vunpack.c.h.b16 %v1171
    %v1543 = vunpack.c.l.b16 %v1172
    %v1544 = vunpack.c.h.b16 %v1172
    %v1545 = vunpack.c.l.b16 %v1173
    %v1546 = vunpack.c.h.b16 %v1173
    %v1547 = vunpack.c.l.b16 %v1174
    %v1548 = vunpack.c.h.b16 %v1174
    %v1549 = vunpack.c.l.b16 %v1175
    %v1550 = vunpack.c.h.b16 %v1175
    %v1551 = vunpack.c.l.b16 %v1176
    %v1552 = vunpack.c.h.b16 %v1176
    %v1553 = vunpack.c.l.b16 %v1177
    %v1554 = vunpack.c.h.b16 %v1177
    %v1555 = vunpack.c.l.b16 %v1178
    %v1556 = vunpack.c.h.b16 %v1178
    %v1557 = vunpack.c.l.b16 %v1179
    %v1558 = vunpack.c.h.b16 %v1179
    %v1559 = vunpack.c.l.b16 %v1180
    %v1560 = vunpack.c.h.b16 %v1180
    %v1561 = vunpack.c.l.b16 %v1181
    %v1562 = vunpack.c.h.b16 %v1181
    %v1563 = vunpack.c.l.b16 %v1182
    %v1564 = vunpack.c.h.b16 %v1182
    %v1565 = vunpack.c.l.b16 %v1183
    %v1566 = vunpack.c.h.b16 %v1183
    %v1567 = vunpack.c.l.b16 %v1184
    %v1568 = vunpack.c.h.b16 %v1184
    %v1569 = vunpack.c.l.b16 %v1185
    %v1570 = vunpack.c.h.b16 %v1185
    %v1571 = vunpack.c.l.b16 %v1186
    %v1572 = vunpack.c.h.b16 %v1186
    %v1573 = vunpack.c.l.b16 %v1187
    %v1574 = vunpack.c.h.b16 %v1187
    %v1575 = vunpack.c.l.b16 %v1188
    %v1576 = vunpack.c.h.b16 %v1188
    %v1577 = vunpack.c.l.b16 %v1189
    %v1578 = vunpack.c.h.b16 %v1189
    %v1579 = vunpack.c.l.b16 %v1190
    %v1580 = vunpack.c.h.b16 %v1190
    %v1581 = vunpack.c.l.b16 %v1191
    %v1582 = vunpack.c.h.b16 %v1191
    %v1583 = vunpack.c.l.b16 %v1192
    %v1584 = vunpack.c.h.b16 %v1192
    %v1585 = vunpack.c.l.b16 %v1193
    %v1586 = vunpack.c.h.b16 %v1193
    %v1587 = vunpack.c.l.b16 %v1194
    %v1588 = vunpack.c.h.b16 %v1194
    %v1589 = vpack.c.b16 %v1337, %v1333
    %v1590 = vpack.c.b16 %v1338, %v1334
    %v1591 = vpack.c.b16 %v1339, %v1335
    %v1592 = vpack.c.b16 %v1340, %v1336
    %v1593 = vpack.c.b16 %v1345, %v1341
    %v1594 = vpack.c.b16 %v1346, %v1342
    %v1595 = vpack.c.b16 %v1347, %v1343
    %v1596 = vpack.c.b16 %v1348, %v1344
    %v1597 = vpack.c.b16 %v1353, %v1349
    %v1598 = vpack.c.b16 %v1354, %v1350
    %v1599 = vpack.c.b16 %v1355, %v1351
    %v1600 = vpack.c.b16 %v1356, %v1352
    %v1601 = vpack.c.b16 %v1361, %v1357
    %v1602 = vpack.c.b16 %v1362, %v1358
    %v1603 = vpack.c.b16 %v1363, %v1359
    %v1604 = vpack.c.b16 %v1364, %v1360
    %v1605 = vpack.c.b16 %v1369, %v1365
    %v1606 = vpack.c.b16 %v1370, %v1366
    %v1607 = vpack.c.b16 %v1371, %v1367
    %v1608 = vpack.c.b16 %v1372, %v1368
    %v1609 = vpack.c.b16 %v1377, %v1373
    %v1610 = vpack.c.b16 %v1378, %v1374
    %v1611 = vpack.c.b16 %v1379, %v1375
    %v1612 = vpack.c.b16 %v1380, %v1376
    %v1613 = vpack.c.b16 %v1385, %v1381
    %v1614 = vpack.c.b16 %v1386, %v1382
    %v1615 = vpack.c.b16 %v1387, %v1383
    %v1616 = vpack.c.b16 %v1388, %v1384
    %v1617 = vpack.c.b16 %v1393, %v1389
    %v1618 = vpack.c.b16 %v1394, %v1390
    %v1619 = vpack.c.b16 %v1395, %v1391
    %v1620 = vpack.c.b16 %v1396, %v1392
    %v1621 = vpack.c.b16 %v1401, %v1397
    %v1622 = vpack.c.b16 %v1402, %v1398
    %v1623 = vpack.c.b16 %v1403, %v1399
    %v1624 = vpack.c.b16 %v1404, %v1400
    %v1625 = vpack.c.b16 %v1409, %v1405
    %v1626 = vpack.c.b16 %v1410, %v1406
    %v1627 = vpack.c.b16 %v1411, %v1407
    %v1628 = vpack.c.b16 %v1412, %v1408
    %v1629 = vpack.c.b16 %v1417, %v1413
    %v1630 = vpack.c.b16 %v1418, %v1414
    %v1631 = vpack.c.b16 %v1419, %v1415
    %v1632 = vpack.c.b16 %v1420, %v1416
    %v1633 = vpack.c.b16 %v1425, %v1421
    %v1634 = vpack.c.b16 %v1426, %v1422
    %v1635 = vpack.c.b16 %v1427, %v1423
    %v1636 = vpack.c.b16 %v1428, %v1424
    %v1637 = vpack.c.b16 %v1433, %v1429
    %v1638 = vpack.c.b16 %v1434, %v1430
    %v1639 = vpack.c.b16 %v1435, %v1431
    %v1640 = vpack.c.b16 %v1436, %v1432
    %v1641 = vpack.c.b16 %v1441, %v1437
    %v1642 = vpack.c.b16 %v1442, %v1438
    %v1643 = vpack.c.b16 %v1443, %v1439
    %v1644 = vpack.c.b16 %v1444, %v1440
    %v1645 = vpack.c.b16 %v1449, %v1445
    %v1646 = vpack.c.b16 %v1450, %v1446
    %v1647 = vpack.c.b16 %v1451, %v1447
    %v1648 = vpack.c.b16 %v1452, %v1448
    %v1649 = vpack.c.b16 %v1457, %v1453
    %v1650 = vpack.c.b16 %v1458, %v1454
    %v1651 = vpack.c.b16 %v1459, %v1455
    %v1652 = vpack.c.b16 %v1460, %v1456
    %v1653 = vpack.c.b16 %v1465, %v1461
    %v1654 = vpack.c.b16 %v1466, %v1462
    %v1655 = vpack.c.b16 %v1467, %v1463
    %v1656 = vpack.c.b16 %v1468, %v1464
    %v1657 = vpack.c.b16 %v1473, %v1469
    %v1658 = vpack.c.b16 %v1474, %v1470
    %v1659 = vpack.c.b16 %v1475, %v1471
    %v1660 = vpack.c.b16 %v1476, %v1472
    %v1661 = vpack.c.b16 %v1481, %v1477
    %v1662 = vpack.c.b16 %v1482, %v1478
    %v1663 = vpack.c.b16 %v1483, %v1479
    %v1664 = vpack.c.b16 %v1484, %v1480
    %v1665 = vpack.c.b16 %v1489, %v1485
    %v1666 = vpack.c.b16 %v1490, %v1486
    %v1667 = vpack.c.b16 %v1491, %v1487
    %v1668 = vpack.c.b16 %v1492, %v1488
    %v1669 = vpack.c.b16 %v1497, %v1493
    %v1670 = vpack.c.b16 %v1498, %v1494
    %v1671 = vpack.c.b16 %v1499, %v1495
    %v1672 = vpack.c.b16 %v1500, %v1496
    %v1673 = vpack.c.b16 %v1505, %v1501
    %v1674 = vpack.c.b16 %v1506, %v1502
    %v1675 = vpack.c.b16 %v1507, %v1503
    %v1676 = vpack.c.b16 %v1508, %v1504
    %v1677 = vpack.c.b16 %v1513, %v1509
    %v1678 = vpack.c.b16 %v1514, %v1510
    %v1679 = vpack.c.b16 %v1515, %v1511
    %v1680 = vpack.c.b16 %v1516, %v1512
    %v1681 = vpack.c.b16 %v1521, %v1517
    %v1682 = vpack.c.b16 %v1522, %v1518
    %v1683 = vpack.c.b16 %v1523, %v1519
    %v1684 = vpack.c.b16 %v1524, %v1520
    %v1685 = vpack.c.b16 %v1529, %v1525
    %v1686 = vpack.c.b16 %v1530, %v1526
    %v1687 = vpack.c.b16 %v1531, %v1527
    %v1688 = vpack.c.b16 %v1532, %v1528
    %v1689 = vpack.c.b16 %v1537, %v1533
    %v1690 = vpack.c.b16 %v1538, %v1534
    %v1691 = vpack.c.b16 %v1539, %v1535
    %v1692 = vpack.c.b16 %v1540, %v1536
    %v1693 = vpack.c.b16 %v1545, %v1541
    %v1694 = vpack.c.b16 %v1546, %v1542
    %v1695 = vpack.c.b16 %v1547, %v1543
    %v1696 = vpack.c.b16 %v1548, %v1544
    %v1697 = vpack.c.b16 %v1553, %v1549
    %v1698 = vpack.c.b16 %v1554, %v1550
    %v1699 = vpack.c.b16 %v1555, %v1551
    %v1700 = vpack.c.b16 %v1556, %v1552
    %v1701 = vpack.c.b16 %v1561, %v1557
    %v1702 = vpack.c.b16 %v1562, %v1558
    %v1703 = vpack.c.b16 %v1563, %v1559
    %v1704 = vpack.c.b16 %v1564, %v1560
    %v1705 = vpack.c.b16 %v1569, %v1565
    %v1706 = vpack.c.b16 %v1570, %v1566
    %v1707 = vpack.c.b16 %v1571, %v1567
    %v1708 = vpack.c.b16 %v1572, %v1568
    %v1709 = vpack.c.b16 %v1577, %v1573
    %v1710 = vpack.c.b16 %v1578, %v1574
    %v1711 = vpack.c.b16 %v1579, %v1575
    %v1712 = vpack.c.b16 %v1580, %v1576
    %v1713 = vpack.c.b16 %v1585, %v1581
    %v1714 = vpack.c.b16 %v1586, %v1582
    %v1715 = vpack.c.b16 %v1587, %v1583
    %v1716 = vpack.c.b16 %v1588, %v1584
    %1845 = vmatpush.bf16.msra.mxu0 %v1617
    %1846 = vmatpush.bf16.msra.mxu0 %v1613
    %1847 = vmatpush.bf16.msra.mxu0 %v1609
    %1848 = vmatpush.bf16.msra.mxu0 %v1605
    %1849 = vmatpush.bf16.msra.mxu0 %v1601
    %1850 = vmatpush.bf16.msra.mxu0 %v1597
    %1851 = vmatpush.bf16.msra.mxu0 %v1593
    %1852 = vmatpush.bf16.msra.mxu0 %v1589
    %1853 = vmatmul.bf16.gmra.mxu0 %v1063
    %v1854 = vpop.f32.mrf.mxu0
    %v1855 = vadd.f32 %v1197, %v1854
    %v1856 = vpop.f32.mrf.mxu0
    %v1857 = vadd.f32 %v1197, %v1856
    %1858 = vdwg.mxu0
    %1859 = vmatpush.bf16.msra.mxu0 %v1649
    %1860 = vmatpush.bf16.msra.mxu0 %v1645
    %1861 = vmatpush.bf16.msra.mxu0 %v1641
    %1862 = vmatpush.bf16.msra.mxu0 %v1637
    %1863 = vmatpush.bf16.msra.mxu0 %v1633
    %1864 = vmatpush.bf16.msra.mxu0 %v1629
    %1865 = vmatpush.bf16.msra.mxu0 %v1625
    %1866 = vmatpush.bf16.msra.mxu0 %v1621
    %1867 = vmatmul.bf16.gmra.mxu0 %v1064
    %v1868 = vpop.f32.mrf.mxu0
    %v1869 = vadd.f32 %v1855, %v1868
    %v1870 = vpop.f32.mrf.mxu0
    %v1871 = vadd.f32 %v1857, %v1870
    %1872 = vdwg.mxu0
    %1873 = vmatpush.bf16.msra.mxu0 %v1681
    %1874 = vmatpush.bf16.msra.mxu0 %v1677
    %1875 = vmatpush.bf16.msra.mxu0 %v1673
    %1876 = vmatpush.bf16.msra.mxu0 %v1669
    %1877 = vmatpush.bf16.msra.mxu0 %v1665
    %1878 = vmatpush.bf16.msra.mxu0 %v1661
    %1879 = vmatpush.bf16.msra.mxu0 %v1657
    %1880 = vmatpush.bf16.msra.mxu0 %v1653
    %1881 = vmatmul.bf16.gmra.mxu0 %v1065
    %v1882 = vpop.f32.mrf.mxu0
    %v1883 = vadd.f32 %v1869, %v1882
    %v1884 = vpop.f32.mrf.mxu0
    %v1885 = vadd.f32 %v1871, %v1884
    %1886 = vdwg.mxu0
    %1887 = vmatpush.bf16.msra.mxu0 %v1713
    %1888 = vmatpush.bf16.msra.mxu0 %v1709
    %1889 = vmatpush.bf16.msra.mxu0 %v1705
    %1890 = vmatpush.bf16.msra.mxu0 %v1701
    %1891 = vmatpush.bf16.msra.mxu0 %v1697
    %1892 = vmatpush.bf16.msra.mxu0 %v1693
    %1893 = vmatpush.bf16.msra.mxu0 %v1689
    %1894 = vmatpush.bf16.msra.mxu0 %v1685
    %1895 = vmatmul.bf16.gmra.mxu0 %v1066
    %v1896 = vpop.f32.mrf.mxu0
    %v1897 = vadd.f32 %v1883, %v1896
    %v1898 = vpop.f32.mrf.mxu0
    %v1899 = vadd.f32 %v1885, %v1898
    %1900 = vdwg.mxu0
    %1901 = vmatpush.bf16.msra.mxu0 %v1618
    %1902 = vmatpush.bf16.msra.mxu0 %v1614
    %1903 = vmatpush.bf16.msra.mxu0 %v1610
    %1904 = vmatpush.bf16.msra.mxu0 %v1606
    %1905 = vmatpush.bf16.msra.mxu0 %v1602
    %1906 = vmatpush.bf16.msra.mxu0 %v1598
    %1907 = vmatpush.bf16.msra.mxu0 %v1594
    %1908 = vmatpush.bf16.msra.mxu0 %v1590
    %1909 = vmatmul.bf16.gmra.mxu0 %v1063
    %v1910 = vpop.f32.mrf.mxu0
    %v1911 = vadd.f32 %v1198, %v1910
    %v1912 = vpop.f32.mrf.mxu0
    %v1913 = vadd.f32 %v1198, %v1912
    %1914 = vdwg.mxu0
    %1915 = vmatpush.bf16.msra.mxu0 %v1650
    %1916 = vmatpush.bf16.msra.mxu0 %v1646
    %1917 = vmatpush.bf16.msra.mxu0 %v1642
    %1918 = vmatpush.bf16.msra.mxu0 %v1638
    %1919 = vmatpush.bf16.msra.mxu0 %v1634
    %1920 = vmatpush.bf16.msra.mxu0 %v1630
    %1921 = vmatpush.bf16.msra.mxu0 %v1626
    %1922 = vmatpush.bf16.msra.mxu0 %v1622
    %1923 = vmatmul.bf16.gmra.mxu0 %v1064
    %v1924 = vpop.f32.mrf.mxu0
    %v1925 = vadd.f32 %v1911, %v1924
    %v1926 = vpop.f32.mrf.mxu0
    %v1927 = vadd.f32 %v1913, %v1926
    %1928 = vdwg.mxu0
    %1929 = vmatpush.bf16.msra.mxu0 %v1682
    %1930 = vmatpush.bf16.msra.mxu0 %v1678
    %1931 = vmatpush.bf16.msra.mxu0 %v1674
    %1932 = vmatpush.bf16.msra.mxu0 %v1670
    %1933 = vmatpush.bf16.msra.mxu0 %v1666
    %1934 = vmatpush.bf16.msra.mxu0 %v1662
    %1935 = vmatpush.bf16.msra.mxu0 %v1658
    %1936 = vmatpush.bf16.msra.mxu0 %v1654
    %1937 = vmatmul.bf16.gmra.mxu0 %v1065
    %v1938 = vpop.f32.mrf.mxu0
    %v1939 = vadd.f32 %v1925, %v1938
    %v1940 = vpop.f32.mrf.mxu0
    %v1941 = vadd.f32 %v1927, %v1940
    %1942 = vdwg.mxu0
    %1943 = vmatpush.bf16.msra.mxu0 %v1714
    %1944 = vmatpush.bf16.msra.mxu0 %v1710
    %1945 = vmatpush.bf16.msra.mxu0 %v1706
    %1946 = vmatpush.bf16.msra.mxu0 %v1702
    %1947 = vmatpush.bf16.msra.mxu0 %v1698
    %1948 = vmatpush.bf16.msra.mxu0 %v1694
    %1949 = vmatpush.bf16.msra.mxu0 %v1690
    %1950 = vmatpush.bf16.msra.mxu0 %v1686
    %1951 = vmatmul.bf16.gmra.mxu0 %v1066
    %v1952 = vpop.f32.mrf.mxu0
    %v1953 = vadd.f32 %v1939, %v1952
    %v1954 = vpop.f32.mrf.mxu0
    %v1955 = vadd.f32 %v1941, %v1954
    %1956 = vdwg.mxu0
    %1957 = vmatpush.bf16.msra.mxu0 %v1619
    %1958 = vmatpush.bf16.msra.mxu0 %v1615
    %1959 = vmatpush.bf16.msra.mxu0 %v1611
    %1960 = vmatpush.bf16.msra.mxu0 %v1607
    %1961 = vmatpush.bf16.msra.mxu0 %v1603
    %1962 = vmatpush.bf16.msra.mxu0 %v1599
    %1963 = vmatpush.bf16.msra.mxu0 %v1595
    %1964 = vmatpush.bf16.msra.mxu0 %v1591
    %1965 = vmatmul.bf16.gmra.mxu0 %v1063
    %v1966 = vpop.f32.mrf.mxu0
    %v1967 = vadd.f32 %v1199, %v1966
    %v1968 = vpop.f32.mrf.mxu0
    %v1969 = vadd.f32 %v1199, %v1968
    %1970 = vdwg.mxu0
    %1971 = vmatpush.bf16.msra.mxu0 %v1651
    %1972 = vmatpush.bf16.msra.mxu0 %v1647
    %1973 = vmatpush.bf16.msra.mxu0 %v1643
    %1974 = vmatpush.bf16.msra.mxu0 %v1639
    %1975 = vmatpush.bf16.msra.mxu0 %v1635
    %1976 = vmatpush.bf16.msra.mxu0 %v1631
    %1977 = vmatpush.bf16.msra.mxu0 %v1627
    %1978 = vmatpush.bf16.msra.mxu0 %v1623
    %1979 = vmatmul.bf16.gmra.mxu0 %v1064
    %v1980 = vpop.f32.mrf.mxu0
    %v1981 = vadd.f32 %v1967, %v1980
    %v1982 = vpop.f32.mrf.mxu0
    %v1983 = vadd.f32 %v1969, %v1982
    %1984 = vdwg.mxu0
    %1985 = vmatpush.bf16.msra.mxu0 %v1683
    %1986 = vmatpush.bf16.msra.mxu0 %v1679
    %1987 = vmatpush.bf16.msra.mxu0 %v1675
    %1988 = vmatpush.bf16.msra.mxu0 %v1671
    %1989 = vmatpush.bf16.msra.mxu0 %v1667
    %1990 = vmatpush.bf16.msra.mxu0 %v1663
    %1991 = vmatpush.bf16.msra.mxu0 %v1659
    %1992 = vmatpush.bf16.msra.mxu0 %v1655
    %1993 = vmatmul.bf16.gmra.mxu0 %v1065
    %v1994 = vpop.f32.mrf.mxu0
    %v1995 = vadd.f32 %v1981, %v1994
    %v1996 = vpop.f32.mrf.mxu0
    %v1997 = vadd.f32 %v1983, %v1996
    %1998 = vdwg.mxu0
    %1999 = vmatpush.bf16.msra.mxu0 %v1715
    %2000 = vmatpush.bf16.msra.mxu0 %v1711
    %2001 = vmatpush.bf16.msra.mxu0 %v1707
    %2002 = vmatpush.bf16.msra.mxu0 %v1703
    %2003 = vmatpush.bf16.msra.mxu0 %v1699
    %2004 = vmatpush.bf16.msra.mxu0 %v1695
    %2005 = vmatpush.bf16.msra.mxu0 %v1691
    %2006 = vmatpush.bf16.msra.mxu0 %v1687
    %2007 = vmatmul.bf16.gmra.mxu0 %v1066
    %v2008 = vpop.f32.mrf.mxu0
    %v2009 = vadd.f32 %v1995, %v2008
    %v2010 = vpop.f32.mrf.mxu0
    %v2011 = vadd.f32 %v1997, %v2010
    %2012 = vdwg.mxu0
    %2013 = vmatpush.bf16.msra.mxu0 %v1620
    %2014 = vmatpush.bf16.msra.mxu0 %v1616
    %2015 = vmatpush.bf16.msra.mxu0 %v1612
    %2016 = vmatpush.bf16.msra.mxu0 %v1608
    %2017 = vmatpush.bf16.msra.mxu0 %v1604
    %2018 = vmatpush.bf16.msra.mxu0 %v1600
    %2019 = vmatpush.bf16.msra.mxu0 %v1596
    %2020 = vmatpush.bf16.msra.mxu0 %v1592
    %2021 = vmatmul.bf16.gmra.mxu0 %v1063
    %v2022 = vpop.f32.mrf.mxu0
    %v2023 = vadd.f32 %v1200, %v2022
    %v2024 = vpop.f32.mrf.mxu0
    %v2025 = vadd.f32 %v1200, %v2024
    %2026 = vdwg.mxu0
    %2027 = vmatpush.bf16.msra.mxu0 %v1652
    %2028 = vmatpush.bf16.msra.mxu0 %v1648
    %2029 = vmatpush.bf16.msra.mxu0 %v1644
    %2030 = vmatpush.bf16.msra.mxu0 %v1640
    %2031 = vmatpush.bf16.msra.mxu0 %v1636
    %2032 = vmatpush.bf16.msra.mxu0 %v1632
    %2033 = vmatpush.bf16.msra.mxu0 %v1628
    %2034 = vmatpush.bf16.msra.mxu0 %v1624
    %2035 = vmatmul.bf16.gmra.mxu0 %v1064
    %v2036 = vpop.f32.mrf.mxu0
    %v2037 = vadd.f32 %v2023, %v2036
    %v2038 = vpop.f32.mrf.mxu0
    %v2039 = vadd.f32 %v2025, %v2038
    %2040 = vdwg.mxu0
    %2041 = vmatpush.bf16.msra.mxu0 %v1684
    %2042 = vmatpush.bf16.msra.mxu0 %v1680
    %2043 = vmatpush.bf16.msra.mxu0 %v1676
    %2044 = vmatpush.bf16.msra.mxu0 %v1672
    %2045 = vmatpush.bf16.msra.mxu0 %v1668
    %2046 = vmatpush.bf16.msra.mxu0 %v1664
    %2047 = vmatpush.bf16.msra.mxu0 %v1660
    %2048 = vmatpush.bf16.msra.mxu0 %v1656
    %2049 = vmatmul.bf16.gmra.mxu0 %v1065
    %v2050 = vpop.f32.mrf.mxu0
    %v2051 = vadd.f32 %v2037, %v2050
    %v2052 = vpop.f32.mrf.mxu0
    %v2053 = vadd.f32 %v2039, %v2052
    %2054 = vdwg.mxu0
    %2055 = vmatpush.bf16.msra.mxu0 %v1716
    %2056 = vmatpush.bf16.msra.mxu0 %v1712
    %2057 = vmatpush.bf16.msra.mxu0 %v1708
    %2058 = vmatpush.bf16.msra.mxu0 %v1704
    %2059 = vmatpush.bf16.msra.mxu0 %v1700
    %2060 = vmatpush.bf16.msra.mxu0 %v1696
    %2061 = vmatpush.bf16.msra.mxu0 %v1692
    %2062 = vmatpush.bf16.msra.mxu0 %v1688
    %2063 = vmatmul.bf16.gmra.mxu0 %v1066
    %v2064 = vpop.f32.mrf.mxu0
    %v2065 = vadd.f32 %v2051, %v2064
    %v2066 = vpop.f32.mrf.mxu0
    %v2067 = vadd.f32 %v2053, %v2066
    %2068 = vdwg.mxu0
    %2069 = vst [vmem:[#allocation2] sm:$0xff] %v1897
    %2070 = vst [vmem:[#allocation2 + $0x8] sm:$0xff] %v1953
    %2071 = vst [vmem:[#allocation2 + $0x10] sm:$0xff] %v2009
    %vm2072 = vcmask 392192
    %2073 = vst.msk [vmem:[#allocation2 + $0x18] sm:$0xff] %vm2072, %v2065
    %2074 = vst [vmem:[#allocation2 + $0x20] sm:$0xff] %v1899
    %2075 = vst [vmem:[#allocation2 + $0x28] sm:$0xff] %v1955
    %2076 = vst [vmem:[#allocation2 + $0x30] sm:$0xff] %v2011
    %2077 = vst.msk [vmem:[#allocation2 + $0x38] sm:$0xff] %vm2072, %v2067
    // Predicated region
    $region22: #{tpu_custom_call.1} parent=1 // pred_check
      _
    $region23: #{tpu_custom_call.1} parent=1 // pred_check_branch
      %2079 = sbr.rel (0) target = $region25
    $region24: #{tpu_custom_call.1} parent=1 // pred_region
      %2081 = vsyncadd [#allocation3], 0
      %s2082 = sshll.u32 [#allocation2], 4
      %s2083 = int_to_ptr.vmem [resolvable:$true] %s2082
      %s2084 = sshll.u32 %s5, 4
      %s2085 = int_to_ptr.hbm [resolvable:$true] %s2084
      %2090 = dma.vmem_to_hbm [thread:$0]  %s2083, 1024, %s2085, [#allocation3], 512, 512, 32
    $region25: #{tpu_custom_call.1} parent=1 // pred_fallthru
      _
    // Predicated region
    $region26: #{tpu_custom_call.1} parent=1 // pred_check
      _
    $region27: #{tpu_custom_call.1} parent=1 // pred_check_branch
      %2092 = sbr.rel (0) target = $region29
    $region28: #{tpu_custom_call.1} parent=1 // pred_region
      %2094 = dma.done [#allocation3], 1024
    $region29: #{tpu_custom_call.1} parent=1 // pred_fallthru
      _
    %2095 = vsyncpa [#allocation3], 1

</llo_original>
